<compile_context>
chip_gen: v7x
topology: tpu7x:2x2x1
jax: 0.10.0
libtpu: 0.0.40
codegen_flags: <defaults>
</compile_context>

<pallas_src>
import math
import functools

import jax
import jax.numpy as jnp
from jax import lax
from jax.experimental import pallas as pl
from jax.experimental.pallas import tpu as pltpu

_MASK_VALUE = -10000.0  # TE / Megatron attention_mask_func fill value


def _flash_attn_kernel(qi_ref, ki_ref, last_ref,            # scalar prefetch (SMEM)
                       q_ref, k_ref, v_ref,                  # VMEM input blocks
                       o_ref,                                # VMEM output block
                       q_scr, m_sc, l_sc, acc_sc,            # VMEM scratch
                       *, tq, tk, inv_norm):
    """One (head-group, work-item) step of causal flash attention.

    Work items enumerate only the lower-triangular (q-tile, kv-tile) pairs, so no grid
    step is wasted on a fully-masked tile.

    Blocks:   q_ref/o_ref (hb, tq, hd) | k_ref/v_ref (hb, tk, hd)
    Scratch:  q_scr (hb, tq, hd) input dtype ; m_sc, l_sc (hb, tq, 1) f32 ;
              acc_sc (hb, tq, hd) f32 — persist across the kv steps of a q tile.
    """
    w = pl.program_id(1)
    qi = qi_ref[w]                 # q-tile index of this work item
    ki = ki_ref[w]                 # kv-tile index of this work item
    is_last = last_ref[w] == 1     # last kv tile for this q tile?

    @pl.when(ki == 0)
    def _init():
        # Hoist the 1/sqrt(d) scaling out of the kv loop: done once per q tile.
        q_scr[...] = q_ref[...] * inv_norm
        m_sc[...] = jnp.full_like(m_sc, -jnp.inf)
        l_sc[...] = jnp.zeros_like(l_sc)
        acc_sc[...] = jnp.zeros_like(acc_sc)

    # BMM1: contract on the last dim of both operands (no K transpose), f32 accumulation.
    s = jnp.einsum("hqd,hkd->hqk", q_scr[...], k_ref[...],
                   preferred_element_type=jnp.float32)

    def _online_softmax_update(scores):
        m_prev = m_sc[...]
        m_new = jnp.maximum(m_prev, jnp.max(scores, axis=-1, keepdims=True))
        alpha = jnp.exp(m_prev - m_new)
        p = jnp.exp(scores - m_new)
        l_sc[...] = alpha * l_sc[...] + jnp.sum(p, axis=-1, keepdims=True)
        # BMM2: probs in V's dtype on the MXU, f32 accumulation.
        acc_sc[...] = alpha * acc_sc[...] + jnp.einsum(
            "hqk,hkd->hqd", p.astype(v_ref.dtype), v_ref[...],
            preferred_element_type=jnp.float32)
        m_sc[...] = m_new

    # Only tiles that intersect the causal diagonal pay for the mask construction.
    on_diag = (ki * tk + tk - 1) > (qi * tq)

    @pl.when(on_diag)
    def _masked():
        row = qi * tq + lax.broadcasted_iota(jnp.int32, (1, tq, tk), 1)
        col = ki * tk + lax.broadcasted_iota(jnp.int32, (1, tq, tk), 2)
        _online_softmax_update(jnp.where(col > row, jnp.float32(_MASK_VALUE), s))

    @pl.when(jnp.logical_not(on_diag))
    def _unmasked():
        _online_softmax_update(s)

    @pl.when(is_last)
    def _epilogue():
        # Normalize once per q tile; approx reciprocal runs on the otherwise-idle EUP.
        # Dropout p=0.0 -> identity.
        o_ref[...] = (acc_sc[...] *
                      pl.reciprocal(l_sc[...], approx=True)).astype(o_ref.dtype)


def _largest_divisor_leq(n, cap):
    cap = max(1, min(n, cap))
    for d in range(cap, 0, -1):
        if n % d == 0:
            return d
    return 1


def _pick_seq_tile(s, target, mult):
    """Largest tile <= target that divides s, preferring dtype-sublane multiples."""
    target = max(1, min(s, target))
    for m in (mult, 8):
        start = target - (target % m)
        for t in range(start, 0, -m):
            if s % t == 0:
                return t
    # TODO(synk): pad pathological sequence lengths instead of a full-length tile.
    return s


def core_attention_forward(query_layer, key_layer, value_layer, attention_mask=None,
                           *, q_tile=256, kv_tile=512, downcast_to_bf16=False):
    """query/key/value: [s, b, np, hn]. Returns [sq, b, np*hn] (causal, dropout p=0)."""
    if attention_mask is not None:
        # TODO(synk): attn_mask_type='padding' / external masks are not implemented.
        raise NotImplementedError("only the causal (attention_mask=None) path is supported")

    sq, b, nh, hd = query_layer.shape
    sk = key_layer.shape[0]
    out_dtype = query_layer.dtype
    inv_norm = 1.0 / math.sqrt(hd)

    if downcast_to_bf16 and query_layer.dtype == jnp.float32:
        query_layer = query_layer.astype(jnp.bfloat16)
        key_layer = key_layer.astype(jnp.bfloat16)
        value_layer = value_layer.astype(jnp.bfloat16)

    compute_dtype = query_layer.dtype
    itemsize = jnp.dtype(compute_dtype).itemsize
    sub_mult = max(8, 32 // max(1, itemsize))   # 8 (f32), 16 (bf16), 32 (int8/fp8)

    tq = _pick_seq_tile(sq, q_tile, sub_mult)
    tk = _pick_seq_tile(sk, kv_tile, sub_mult)
    nq, nk = sq // tq, sk // tk

    bh = b * nh
    # Head packing: target ~512 KiB of K/V block per step; keep >=2 head groups so v7x's
    # two TensorCores both get work from the "parallel" axis.
    kv_bytes_per_head = tk * hd * itemsize
    hb_cap = max(1, (512 * 1024) // max(1, kv_bytes_per_head))
    hb_cap = min(hb_cap, 8)
    if bh >= 2:
        hb_cap = min(hb_cap, max(1, bh // 2))
    hb = _largest_divisor_leq(bh, hb_cap)

    # [s, b, h, d] -> [b*h, s, d]
    def to_bhsd(x, s):
        return jnp.transpose(x, (1, 2, 0, 3)).reshape(bh, s, hd)

    q = to_bhsd(query_layer, sq)
    k = to_bhsd(key_layer, sk)
    v = to_bhsd(value_layer, sk)

    # Causal work list: only lower-triangular (q-tile, kv-tile) pairs are visited.
    # Fully-masked tiles contribute exactly 0 (exp(-10000 - m) underflows), so skipping
    # them is numerically identical to the reference.
    qi_list, ki_list, last_list = [], [], []
    for qi in range(nq):
        last = min((qi * tq + tq - 1) // tk, nk - 1)
        for ki in range(last + 1):
            qi_list.append(qi)
            ki_list.append(ki)
            last_list.append(1 if ki == last else 0)
    n_work = len(qi_list)
    qi_map = jnp.asarray(qi_list, jnp.int32)
    ki_map = jnp.asarray(ki_list, jnp.int32)
    last_map = jnp.asarray(last_list, jnp.int32)

    def q_index_map(g, w, qi_m, ki_m, last_m):
        return (g, qi_m[w], 0)

    def kv_index_map(g, w, qi_m, ki_m, last_m):
        return (g, ki_m[w], 0)

    kernel = functools.partial(_flash_attn_kernel, tq=tq, tk=tk, inv_norm=inv_norm)

    cost = pl.CostEstimate(
        flops=int(2 * 2 * bh * sq * sk * hd * 0.5),          # two matmuls, causal-halved
        transcendentals=int(bh * sq * sk * 0.5),
        bytes_accessed=int(itemsize * bh * hd * (2 * sq + 2 * sk)),
    )

    out = pl.pallas_call(
        kernel,
        out_shape=jax.ShapeDtypeStruct((bh, sq, hd), out_dtype),
        grid_spec=pltpu.PrefetchScalarGridSpec(
            num_scalar_prefetch=3,
            grid=(bh // hb, n_work),
            in_specs=[
                pl.BlockSpec((hb, tq, hd), q_index_map),
                pl.BlockSpec((hb, tk, hd), kv_index_map),
                pl.BlockSpec((hb, tk, hd), kv_index_map),
            ],
            out_specs=pl.BlockSpec((hb, tq, hd), q_index_map),
            scratch_shapes=[
                pltpu.VMEM((hb, tq, hd), compute_dtype),   # scaled Q (per q tile)
                pltpu.VMEM((hb, tq, 1), jnp.float32),      # running max
                pltpu.VMEM((hb, tq, 1), jnp.float32),      # running sum
                pltpu.VMEM((hb, tq, hd), jnp.float32),     # running context
            ],
        ),
        compiler_params=pltpu.CompilerParams(
            dimension_semantics=("parallel", "arbitrary"),
            vmem_limit_bytes=48 * 1024 * 1024),             # legal on v5e/v6e/v7x
        cost_estimate=cost,
    )(qi_map, ki_map, last_map, q, k, v)

    # [b*h, sq, d] -> [b, h, sq, d] -> permute(2,0,1,3) -> [sq, b, h*d]
    ctx = out.reshape(b, nh, sq, hd)
    ctx = jnp.transpose(ctx, (2, 0, 1, 3)).reshape(sq, b, nh * hd)
    return ctx


def _reference(query_layer, key_layer, value_layer):
    """Pure-JAX reference matching CoreAttention semantics (causal, dropout p=0)."""
    sq, b, nh, hd = query_layer.shape
    sk = key_layer.shape[0]
    q = jnp.transpose(query_layer, (1, 2, 0, 3))   # [b, h, sq, d]
    k = jnp.transpose(key_layer, (1, 2, 0, 3))     # [b, h, sk, d]
    v = jnp.transpose(value_layer, (1, 2, 0, 3))   # [b, h, sk, d]
    scores = jnp.einsum("bhqd,bhkd->bhqk", q, k) / math.sqrt(hd)
    mask = jnp.triu(jnp.ones((sq, sk), bool), k=1)   # col > row
    scores = jnp.where(mask, _MASK_VALUE, scores)
    probs = jax.nn.softmax(scores, axis=-1)
    ctx = jnp.einsum("bhqk,bhkd->bhqd", probs, v)
    return jnp.transpose(ctx, (2, 0, 1, 3)).reshape(sq, b, nh * hd)


if __name__ == "__main__":
    batch, num_heads = 2, 4

    # Test 1: small deterministic example (seq=8, kv_channels=32), single work item.
    sq = sk = 8
    head_dim = 32
    kq, kk, kv = jax.random.split(jax.random.PRNGKey(0), 3)
    query = jax.random.normal(kq, (sq, batch, num_heads, head_dim), dtype=jnp.float32)
    key_l = jax.random.normal(kk, (sk, batch, num_heads, head_dim), dtype=jnp.float32)
    value = jax.random.normal(kv, (sk, batch, num_heads, head_dim), dtype=jnp.float32)
    out = jax.block_until_ready(core_attention_forward(query, key_l, value))
    assert out.shape == (sq, batch, num_heads * head_dim), out.shape
    ref = _reference(query, key_l, value)
    assert jnp.allclose(out, ref, atol=5e-3, rtol=5e-3), "mismatch vs reference (small)"

    # Test 2: multi-tile causal work list (4x4 tile grid -> only 10 visited work items),
    # exercises masked-diagonal and unmasked below-diagonal paths plus init/epilogue.
    sq2 = sk2 = 64
    kq2, kk2, kv2 = jax.random.split(jax.random.PRNGKey(1), 3)
    query2 = jax.random.normal(kq2, (sq2, batch, num_heads, head_dim), dtype=jnp.float32)
    key2 = jax.random.normal(kk2, (sk2, batch, num_heads, head_dim), dtype=jnp.float32)
    value2 = jax.random.normal(kv2, (sk2, batch, num_heads, head_dim), dtype=jnp.float32)
    out2 = jax.block_until_ready(
        core_attention_forward(query2, key2, value2, q_tile=16, kv_tile=16))
    ref2 = _reference(query2, key2, value2)
    assert jnp.allclose(out2, ref2, atol=5e-3, rtol=5e-3), "mismatch vs reference (tiled)"

    # Test 3: bf16 inputs exercise the bf16 MXU path (hd=64, seq=128).
    sq3 = sk3 = 128
    hd3 = 64
    kq3, kk3, kv3 = jax.random.split(jax.random.PRNGKey(2), 3)
    query3 = jax.random.normal(kq3, (sq3, batch, num_heads, hd3), dtype=jnp.bfloat16)
    key3 = jax.random.normal(kk3, (sk3, batch, num_heads, hd3), dtype=jnp.bfloat16)
    value3 = jax.random.normal(kv3, (sk3, batch, num_heads, hd3), dtype=jnp.bfloat16)
    out3 = jax.block_until_ready(core_attention_forward(query3, key3, value3))
    ref3 = _reference(query3.astype(jnp.float32), key3.astype(jnp.float32),
                      value3.astype(jnp.float32))
    assert jnp.allclose(out3.astype(jnp.float32), ref3, atol=5e-2, rtol=5e-2), \
        "mismatch vs reference (bf16)"

    print("KERNEL_OK")
</pallas_src>

<mosaic_0001>
module attributes {stable_mosaic.version = 11 : i64} {
  func.func @_flash_attn_kernel(%arg0: i32, %arg1: i32, %arg2: memref<1xi32, #tpu.memory_space<smem>>, %arg3: memref<1xi32, #tpu.memory_space<smem>>, %arg4: memref<1xi32, #tpu.memory_space<smem>>, %arg5: memref<4x8x32xf32, #tpu.memory_space<vmem>>, %arg6: memref<4x8x32xf32, #tpu.memory_space<vmem>>, %arg7: memref<4x8x32xf32, #tpu.memory_space<vmem>>, %arg8: memref<4x8x32xf32, #tpu.memory_space<vmem>>, %arg9: memref<4x8x32xf32, #tpu.memory_space<vmem>>, %arg10: memref<4x8x1xf32, #tpu.memory_space<vmem>>, %arg11: memref<4x8x1xf32, #tpu.memory_space<vmem>>, %arg12: memref<4x8x32xf32, #tpu.memory_space<vmem>>) attributes {dimension_semantics = [#tpu.dimension_semantics<parallel>, #tpu.dimension_semantics<arbitrary>], iteration_bounds = array<i64: 2, 1>, scalar_prefetch = 3 : i64, scratch_operands = 4 : i64, tpu.core_type = #tpu.core_type<tc>, window_params = [{transform_indices = @transform_0, window_bounds = array<i64: 4, 8, 32>}, {transform_indices = @transform_1, window_bounds = array<i64: 4, 8, 32>}, {transform_indices = @transform_2, window_bounds = array<i64: 4, 8, 32>}, {transform_indices = @transform_3, window_bounds = array<i64: 4, 8, 32>}]} {
    %0 = arith.index_cast %arg1 : i32 to index
    %1 = memref.load %arg2[%0] : memref<1xi32, #tpu.memory_space<smem>>
    %2 = arith.index_cast %arg1 : i32 to index
    %3 = memref.load %arg3[%2] : memref<1xi32, #tpu.memory_space<smem>>
    %4 = arith.index_cast %arg1 : i32 to index
    %5 = memref.load %arg4[%4] : memref<1xi32, #tpu.memory_space<smem>>
    %c1_i32 = arith.constant 1 : i32
    %6 = arith.cmpi eq, %5, %c1_i32 : i32
    %c0_i32 = arith.constant 0 : i32
    %7 = arith.cmpi eq, %3, %c0_i32 : i32
    %8 = arith.extui %7 : i1 to i32
    %c0_i32_0 = arith.constant 0 : i32
    %9 = arith.cmpi ne, %8, %c0_i32_0 : i32
    scf.if %9 {
      %c0_12 = arith.constant 0 : index
      %c0_13 = arith.constant 0 : index
      %c0_14 = arith.constant 0 : index
      %25 = vector.load %arg5[%c0_12, %c0_13, %c0_14] : memref<4x8x32xf32, #tpu.memory_space<vmem>>, vector<4x8x32xf32>
      %cst_15 = arith.constant 0.176776692 : f32
      %26 = vector.broadcast %cst_15 : f32 to vector<4x8x32xf32>
      %27 = arith.mulf %25, %26 : vector<4x8x32xf32>
      %c0_16 = arith.constant 0 : index
      %c0_17 = arith.constant 0 : index
      %c0_18 = arith.constant 0 : index
      %28 = vector.load %arg9[%c0_16, %c0_17, %c0_18] : memref<4x8x32xf32, #tpu.memory_space<vmem>>, vector<4x8x32xf32>
      tpu.vector_store %arg9[%c0_16, %c0_17, %c0_18], %27 {strides = array<i32>} : memref<4x8x32xf32, #tpu.memory_space<vmem>>, vector<4x8x32xf32>,
      %cst_19 = arith.constant 0xFF800000 : f32
      %29 = vector.broadcast %cst_19 : f32 to vector<4x8x1xf32>
      %c0_20 = arith.constant 0 : index
      %c0_21 = arith.constant 0 : index
      %c0_22 = arith.constant 0 : index
      %30 = vector.load %arg10[%c0_20, %c0_21, %c0_22] : memref<4x8x1xf32, #tpu.memory_space<vmem>>, vector<4x8x1xf32>
      tpu.vector_store %arg10[%c0_20, %c0_21, %c0_22], %29 {strides = array<i32>} : memref<4x8x1xf32, #tpu.memory_space<vmem>>, vector<4x8x1xf32>,
      %cst_23 = arith.constant 0.000000e+00 : f32
      %31 = vector.broadcast %cst_23 : f32 to vector<4x8x1xf32>
      %c0_24 = arith.constant 0 : index
      %c0_25 = arith.constant 0 : index
      %c0_26 = arith.constant 0 : index
      %32 = vector.load %arg11[%c0_24, %c0_25, %c0_26] : memref<4x8x1xf32, #tpu.memory_space<vmem>>, vector<4x8x1xf32>
      tpu.vector_store %arg11[%c0_24, %c0_25, %c0_26], %31 {strides = array<i32>} : memref<4x8x1xf32, #tpu.memory_space<vmem>>, vector<4x8x1xf32>,
      %cst_27 = arith.constant 0.000000e+00 : f32
      %33 = vector.broadcast %cst_27 : f32 to vector<4x8x32xf32>
      %c0_28 = arith.constant 0 : index
      %c0_29 = arith.constant 0 : index
      %c0_30 = arith.constant 0 : index
      %34 = vector.load %arg12[%c0_28, %c0_29, %c0_30] : memref<4x8x32xf32, #tpu.memory_space<vmem>>, vector<4x8x32xf32>
      tpu.vector_store %arg12[%c0_28, %c0_29, %c0_30], %33 {strides = array<i32>} : memref<4x8x32xf32, #tpu.memory_space<vmem>>, vector<4x8x32xf32>,
    } else {
    }
    %c0 = arith.constant 0 : index
    %c0_1 = arith.constant 0 : index
    %c0_2 = arith.constant 0 : index
    %10 = vector.load %arg9[%c0, %c0_1, %c0_2] : memref<4x8x32xf32, #tpu.memory_space<vmem>>, vector<4x8x32xf32>
    %c0_3 = arith.constant 0 : index
    %c0_4 = arith.constant 0 : index
    %c0_5 = arith.constant 0 : index
    %11 = vector.load %arg6[%c0_3, %c0_4, %c0_5] : memref<4x8x32xf32, #tpu.memory_space<vmem>>, vector<4x8x32xf32>
    "tpu.trace_start"() <{level = 10 : i32, message = "hqd,hkd->hqk"}> : () -> ()
    %cst = arith.constant dense<0.000000e+00> : vector<4x8x8xf32>
    %12 = tpu.matmul %10, %11, %cst {dimension_numbers = #tpu.dot_dimension_numbers<[2], [2], [1], [1], [0, 0, 0, 1, 1, 1], [0], [0]>} : vector<4x8x32xf32>, vector<4x8x32xf32>, vector<4x8x8xf32> -> vector<4x8x8xf32>
    "tpu.trace_stop"() : () -> ()
    %c8_i32 = arith.constant 8 : i32
    %13 = arith.muli %3, %c8_i32 : i32
    %c8_i32_6 = arith.constant 8 : i32
    %14 = arith.addi %13, %c8_i32_6 : i32
    %c1_i32_7 = arith.constant 1 : i32
    %15 = arith.subi %14, %c1_i32_7 : i32
    %c8_i32_8 = arith.constant 8 : i32
    %16 = arith.muli %1, %c8_i32_8 : i32
    %17 = arith.cmpi sgt, %15, %16 : i32
    %18 = arith.extui %17 : i1 to i32
    %c0_i32_9 = arith.constant 0 : i32
    %19 = arith.cmpi ne, %18, %c0_i32_9 : i32
    scf.if %19 {
      %c8_i32_12 = arith.constant 8 : i32
      %25 = arith.muli %1, %c8_i32_12 : i32
      %26 = tpu.iota {dimensions = array<i32: 1>} : vector<1x8x8xi32>
      %27 = vector.broadcast %25 : i32 to vector<1x8x8xi32>
      %28 = arith.addi %27, %26 : vector<1x8x8xi32>
      %c8_i32_13 = arith.constant 8 : i32
      %29 = arith.muli %3, %c8_i32_13 : i32
      %30 = tpu.iota {dimensions = array<i32: 2>} : vector<1x8x8xi32>
      %31 = vector.broadcast %29 : i32 to vector<1x8x8xi32>
      %32 = arith.addi %31, %30 : vector<1x8x8xi32>
      %33 = arith.cmpi sgt, %32, %28 : vector<1x8x8xi32>
      %cst_14 = arith.constant -1.000000e+04 : f32
      %34 = vector.shape_cast %33 : vector<1x8x8xi1> to vector<1x8x8xi1>
      %35 = vector.broadcast %34 : vector<1x8x8xi1> to vector<4x8x8xi1>
      %36 = vector.broadcast %cst_14 : f32 to vector<4x8x8xf32>
      %37 = arith.select %35, %36, %12 : vector<4x8x8xi1>, vector<4x8x8xf32>
      %c0_15 = arith.constant 0 : index
      %c0_16 = arith.constant 0 : index
      %c0_17 = arith.constant 0 : index
      %38 = vector.load %arg10[%c0_15, %c0_16, %c0_17] : memref<4x8x1xf32, #tpu.memory_space<vmem>>, vector<4x8x1xf32>
      %cst_18 = arith.constant dense<0xFF800000> : vector<4x8xf32>
      %39 = vector.multi_reduction <maximumf>, %37, %cst_18 [2] : vector<4x8x8xf32> to vector<4x8xf32>
      %40 = vector.shape_cast %39 : vector<4x8xf32> to vector<4x8x1xf32>
      %41 = arith.maximumf %38, %40 : vector<4x8x1xf32>
      %42 = arith.subf %38, %41 : vector<4x8x1xf32>
      %43 = math.exp %42 : vector<4x8x1xf32>
      %44 = vector.broadcast %41 : vector<4x8x1xf32> to vector<4x8x8xf32>
      %45 = arith.subf %37, %44 : vector<4x8x8xf32>
      %46 = math.exp %45 : vector<4x8x8xf32>
      %c0_19 = arith.constant 0 : index
      %c0_20 = arith.constant 0 : index
      %c0_21 = arith.constant 0 : index
      %47 = vector.load %arg11[%c0_19, %c0_20, %c0_21] : memref<4x8x1xf32, #tpu.memory_space<vmem>>, vector<4x8x1xf32>
      %48 = arith.mulf %43, %47 : vector<4x8x1xf32>
      %cst_22 = arith.constant dense<0.000000e+00> : vector<4x8xf32>
      %49 = vector.multi_reduction <add>, %46, %cst_22 [2] : vector<4x8x8xf32> to vector<4x8xf32>
      %50 = vector.shape_cast %49 : vector<4x8xf32> to vector<4x8x1xf32>
      %51 = arith.addf %48, %50 : vector<4x8x1xf32>
      %c0_23 = arith.constant 0 : index
      %c0_24 = arith.constant 0 : index
      %c0_25 = arith.constant 0 : index
      %52 = vector.load %arg11[%c0_23, %c0_24, %c0_25] : memref<4x8x1xf32, #tpu.memory_space<vmem>>, vector<4x8x1xf32>
      tpu.vector_store %arg11[%c0_23, %c0_24, %c0_25], %51 {strides = array<i32>} : memref<4x8x1xf32, #tpu.memory_space<vmem>>, vector<4x8x1xf32>,
      %c0_26 = arith.constant 0 : index
      %c0_27 = arith.constant 0 : index
      %c0_28 = arith.constant 0 : index
      %53 = vector.load %arg12[%c0_26, %c0_27, %c0_28] : memref<4x8x32xf32, #tpu.memory_space<vmem>>, vector<4x8x32xf32>
      %54 = vector.broadcast %43 : vector<4x8x1xf32> to vector<4x8x32xf32>
      %55 = arith.mulf %54, %53 : vector<4x8x32xf32>
      %c0_29 = arith.constant 0 : index
      %c0_30 = arith.constant 0 : index
      %c0_31 = arith.constant 0 : index
      %56 = vector.load %arg7[%c0_29, %c0_30, %c0_31] : memref<4x8x32xf32, #tpu.memory_space<vmem>>, vector<4x8x32xf32>
      "tpu.trace_start"() <{level = 10 : i32, message = "hqk,hkd->hqd"}> : () -> ()
      %cst_32 = arith.constant dense<0.000000e+00> : vector<4x8x32xf32>
      %57 = tpu.matmul %46, %56, %cst_32 {dimension_numbers = #tpu.dot_dimension_numbers<[2], [1], [1], [2], [0, 0, 0, 1, 1, 2], [0], [0]>} : vector<4x8x8xf32>, vector<4x8x32xf32>, vector<4x8x32xf32> -> vector<4x8x32xf32>
      "tpu.trace_stop"() : () -> ()
      %58 = arith.addf %55, %57 : vector<4x8x32xf32>
      %c0_33 = arith.constant 0 : index
      %c0_34 = arith.constant 0 : index
      %c0_35 = arith.constant 0 : index
      %59 = vector.load %arg12[%c0_33, %c0_34, %c0_35] : memref<4x8x32xf32, #tpu.memory_space<vmem>>, vector<4x8x32xf32>
      tpu.vector_store %arg12[%c0_33, %c0_34, %c0_35], %58 {strides = array<i32>} : memref<4x8x32xf32, #tpu.memory_space<vmem>>, vector<4x8x32xf32>,
      %c0_36 = arith.constant 0 : index
      %c0_37 = arith.constant 0 : index
      %c0_38 = arith.constant 0 : index
      %60 = vector.load %arg10[%c0_36, %c0_37, %c0_38] : memref<4x8x1xf32, #tpu.memory_space<vmem>>, vector<4x8x1xf32>
      tpu.vector_store %arg10[%c0_36, %c0_37, %c0_38], %41 {strides = array<i32>} : memref<4x8x1xf32, #tpu.memory_space<vmem>>, vector<4x8x1xf32>,
    } else {
    }
    %true = arith.constant true
    %20 = arith.xori %17, %true : i1
    %21 = arith.extui %20 : i1 to i32
    %c0_i32_10 = arith.constant 0 : i32
    %22 = arith.cmpi ne, %21, %c0_i32_10 : i32
    scf.if %22 {
      %c0_12 = arith.constant 0 : index
      %c0_13 = arith.constant 0 : index
      %c0_14 = arith.constant 0 : index
      %25 = vector.load %arg10[%c0_12, %c0_13, %c0_14] : memref<4x8x1xf32, #tpu.memory_space<vmem>>, vector<4x8x1xf32>
      %cst_15 = arith.constant dense<0xFF800000> : vector<4x8xf32>
      %26 = vector.multi_reduction <maximumf>, %12, %cst_15 [2] : vector<4x8x8xf32> to vector<4x8xf32>
      %27 = vector.shape_cast %26 : vector<4x8xf32> to vector<4x8x1xf32>
      %28 = arith.maximumf %25, %27 : vector<4x8x1xf32>
      %29 = arith.subf %25, %28 : vector<4x8x1xf32>
      %30 = math.exp %29 : vector<4x8x1xf32>
      %31 = vector.broadcast %28 : vector<4x8x1xf32> to vector<4x8x8xf32>
      %32 = arith.subf %12, %31 : vector<4x8x8xf32>
      %33 = math.exp %32 : vector<4x8x8xf32>
      %c0_16 = arith.constant 0 : index
      %c0_17 = arith.constant 0 : index
      %c0_18 = arith.constant 0 : index
      %34 = vector.load %arg11[%c0_16, %c0_17, %c0_18] : memref<4x8x1xf32, #tpu.memory_space<vmem>>, vector<4x8x1xf32>
      %35 = arith.mulf %30, %34 : vector<4x8x1xf32>
      %cst_19 = arith.constant dense<0.000000e+00> : vector<4x8xf32>
      %36 = vector.multi_reduction <add>, %33, %cst_19 [2] : vector<4x8x8xf32> to vector<4x8xf32>
      %37 = vector.shape_cast %36 : vector<4x8xf32> to vector<4x8x1xf32>
      %38 = arith.addf %35, %37 : vector<4x8x1xf32>
      %c0_20 = arith.constant 0 : index
      %c0_21 = arith.constant 0 : index
      %c0_22 = arith.constant 0 : index
      %39 = vector.load %arg11[%c0_20, %c0_21, %c0_22] : memref<4x8x1xf32, #tpu.memory_space<vmem>>, vector<4x8x1xf32>
      tpu.vector_store %arg11[%c0_20, %c0_21, %c0_22], %38 {strides = array<i32>} : memref<4x8x1xf32, #tpu.memory_space<vmem>>, vector<4x8x1xf32>,
      %c0_23 = arith.constant 0 : index
      %c0_24 = arith.constant 0 : index
      %c0_25 = arith.constant 0 : index
      %40 = vector.load %arg12[%c0_23, %c0_24, %c0_25] : memref<4x8x32xf32, #tpu.memory_space<vmem>>, vector<4x8x32xf32>
      %41 = vector.broadcast %30 : vector<4x8x1xf32> to vector<4x8x32xf32>
      %42 = arith.mulf %41, %40 : vector<4x8x32xf32>
      %c0_26 = arith.constant 0 : index
      %c0_27 = arith.constant 0 : index
      %c0_28 = arith.constant 0 : index
      %43 = vector.load %arg7[%c0_26, %c0_27, %c0_28] : memref<4x8x32xf32, #tpu.memory_space<vmem>>, vector<4x8x32xf32>
      "tpu.trace_start"() <{level = 10 : i32, message = "hqk,hkd->hqd"}> : () -> ()
      %cst_29 = arith.constant dense<0.000000e+00> : vector<4x8x32xf32>
      %44 = tpu.matmul %33, %43, %cst_29 {dimension_numbers = #tpu.dot_dimension_numbers<[2], [1], [1], [2], [0, 0, 0, 1, 1, 2], [0], [0]>} : vector<4x8x8xf32>, vector<4x8x32xf32>, vector<4x8x32xf32> -> vector<4x8x32xf32>
      "tpu.trace_stop"() : () -> ()
      %45 = arith.addf %42, %44 : vector<4x8x32xf32>
      %c0_30 = arith.constant 0 : index
      %c0_31 = arith.constant 0 : index
      %c0_32 = arith.constant 0 : index
      %46 = vector.load %arg12[%c0_30, %c0_31, %c0_32] : memref<4x8x32xf32, #tpu.memory_space<vmem>>, vector<4x8x32xf32>
      tpu.vector_store %arg12[%c0_30, %c0_31, %c0_32], %45 {strides = array<i32>} : memref<4x8x32xf32, #tpu.memory_space<vmem>>, vector<4x8x32xf32>,
      %c0_33 = arith.constant 0 : index
      %c0_34 = arith.constant 0 : index
      %c0_35 = arith.constant 0 : index
      %47 = vector.load %arg10[%c0_33, %c0_34, %c0_35] : memref<4x8x1xf32, #tpu.memory_space<vmem>>, vector<4x8x1xf32>
      tpu.vector_store %arg10[%c0_33, %c0_34, %c0_35], %28 {strides = array<i32>} : memref<4x8x1xf32, #tpu.memory_space<vmem>>, vector<4x8x1xf32>,
    } else {
    }
    %23 = arith.extui %6 : i1 to i32
    %c0_i32_11 = arith.constant 0 : i32
    %24 = arith.cmpi ne, %23, %c0_i32_11 : i32
    scf.if %24 {
      %c0_12 = arith.constant 0 : index
      %c0_13 = arith.constant 0 : index
      %c0_14 = arith.constant 0 : index
      %25 = vector.load %arg12[%c0_12, %c0_13, %c0_14] : memref<4x8x32xf32, #tpu.memory_space<vmem>>, vector<4x8x32xf32>
      %c0_15 = arith.constant 0 : index
      %c0_16 = arith.constant 0 : index
      %c0_17 = arith.constant 0 : index
      %26 = vector.load %arg11[%c0_15, %c0_16, %c0_17] : memref<4x8x1xf32, #tpu.memory_space<vmem>>, vector<4x8x1xf32>
      %27 = tpu.reciprocal %26 {approx = true} : vector<4x8x1xf32> -> vector<4x8x1xf32>
      %28 = vector.broadcast %27 : vector<4x8x1xf32> to vector<4x8x32xf32>
      %29 = arith.mulf %25, %28 : vector<4x8x32xf32>
      %c0_18 = arith.constant 0 : index
      %c0_19 = arith.constant 0 : index
      %c0_20 = arith.constant 0 : index
      %30 = vector.load %arg8[%c0_18, %c0_19, %c0_20] : memref<4x8x32xf32, #tpu.memory_space<vmem>>, vector<4x8x32xf32>
      tpu.vector_store %arg8[%c0_18, %c0_19, %c0_20], %29 {strides = array<i32>} : memref<4x8x32xf32, #tpu.memory_space<vmem>>, vector<4x8x32xf32>,
    } else {
    }
    return
  }
  func.func @transform_0(%arg0: i32, %arg1: i32, %arg2: memref<1xi32, #tpu.memory_space<smem>>, %arg3: memref<1xi32, #tpu.memory_space<smem>>, %arg4: memref<1xi32, #tpu.memory_space<smem>>) -> (i32, i32, i32) {
    %0 = arith.index_cast %arg1 : i32 to index
    %1 = memref.load %arg2[%0] : memref<1xi32, #tpu.memory_space<smem>>
    %c0_i32 = arith.constant 0 : i32
    %c0_i32_0 = arith.constant 0 : i32
    return %arg0, %1, %c0_i32 : i32, i32, i32
  }
  func.func @transform_1(%arg0: i32, %arg1: i32, %arg2: memref<1xi32, #tpu.memory_space<smem>>, %arg3: memref<1xi32, #tpu.memory_space<smem>>, %arg4: memref<1xi32, #tpu.memory_space<smem>>) -> (i32, i32, i32) {
    %0 = arith.index_cast %arg1 : i32 to index
    %1 = memref.load %arg3[%0] : memref<1xi32, #tpu.memory_space<smem>>
    %c0_i32 = arith.constant 0 : i32
    %c0_i32_0 = arith.constant 0 : i32
    return %arg0, %1, %c0_i32 : i32, i32, i32
  }
  func.func @transform_2(%arg0: i32, %arg1: i32, %arg2: memref<1xi32, #tpu.memory_space<smem>>, %arg3: memref<1xi32, #tpu.memory_space<smem>>, %arg4: memref<1xi32, #tpu.memory_space<smem>>) -> (i32, i32, i32) {
    %0 = arith.index_cast %arg1 : i32 to index
    %1 = memref.load %arg3[%0] : memref<1xi32, #tpu.memory_space<smem>>
    %c0_i32 = arith.constant 0 : i32
    %c0_i32_0 = arith.constant 0 : i32
    return %arg0, %1, %c0_i32 : i32, i32, i32
  }
  func.func @transform_3(%arg0: i32, %arg1: i32, %arg2: memref<1xi32, #tpu.memory_space<smem>>, %arg3: memref<1xi32, #tpu.memory_space<smem>>, %arg4: memref<1xi32, #tpu.memory_space<smem>>) -> (i32, i32, i32) {
    %0 = arith.index_cast %arg1 : i32 to index
    %1 = memref.load %arg2[%0] : memref<1xi32, #tpu.memory_space<smem>>
    %c0_i32 = arith.constant 0 : i32
    %c0_i32_0 = arith.constant 0 : i32
    return %arg0, %1, %c0_i32 : i32, i32, i32
  }
}

</mosaic_0001>

<llo_original>
// kernel: tpu_custom_call.1
$region0: #{tpu_custom_call.1}
  #allocation0 [shape = 'u32[]', space=smem, size = 0x4, offset = 0x4, fixed_abs, tag = 'smem constant byte address 0x4 - core index']
  #allocation1 [shape = 'u32[144,128]{1,0:T(1,128)}', space=vmem, size = 0x12000, scoped, tag = 'internal scratch']
  #allocation2 [shape = 'f32[4,8,32]{2,1,0:T(8,128)}', space=vmem, size = 0x4000, scoped, tag = 'scratch operand']
  #allocation3 [shape = 'f32[4,8,1]{2,1,0:T(8,128)}', space=vmem, size = 0x4000, scoped, tag = 'scratch operand']
  #allocation4 [shape = 'f32[4,8,1]{2,1,0:T(8,128)}', space=vmem, size = 0x4000, scoped, tag = 'scratch operand']
  #allocation5 [shape = 'f32[4,8,32]{2,1,0:T(8,128)}', space=vmem, size = 0x4000, scoped, tag = 'scratch operand']
  #allocation6 [shape = 's32[1]{0}', space=sflag, size = 0x4, scoped, tag = 'scoped memory for tpu_custom_call.1']
  #allocation7 [shape = 's32[1]{0:T(128)S(6)}', space=smem, size = 0x200, scoped, tag = 'prefetched SMEM operand 0']
  #allocation8 [shape = 's32[1]{0:T(128)S(6)}', space=smem, size = 0x200, scoped, tag = 'prefetched SMEM operand 1']
  #allocation9 [shape = 's32[1]{0:T(128)S(6)}', space=smem, size = 0x200, scoped, tag = 'prefetched SMEM operand 2']
  %s0 = inlined_call_operand.<no memory space> [shape: s32[1], index: 0, kind: input, shape index: {}]
  %s1 = inlined_call_operand.<no memory space> [shape: s32[1], index: 1, kind: input, shape index: {}]
  %s2 = inlined_call_operand.<no memory space> [shape: s32[1], index: 2, kind: input, shape index: {}]
  %s3 = inlined_call_operand.hbm [shape: f32[8,8,32], index: 3, kind: input, shape index: {}]
  %s4 = inlined_call_operand.hbm [shape: f32[8,8,32], index: 4, kind: input, shape index: {}]
  %s5 = inlined_call_operand.hbm [shape: f32[8,8,32], index: 5, kind: input, shape index: {}]
  %s6 = inlined_call_operand.hbm [shape: f32[8,8,32], index: 6, kind: output, shape index: {}]
  %s7 = sld [smem:[#allocation0]]
  $region73: #{tpu_custom_call.1} parent=0
    _
  %s9 = ssub.s32 1, %s7
  %s10 = scalar_select 0, %s9, %s7
  %11 = sst [smem:[#allocation7]] %s0
  %12 = sst [smem:[#allocation8]] %s1
  %13 = sst [smem:[#allocation9]] %s2
  $region1: #{tpu_custom_call.1} parent=0
    #allocation10 [shape = 'u8[32768]{0}', space=vmem, size = 0x8000, scoped, tag = 'input window, operand 3']
    #allocation11 [shape = 's32[2]{0}', space=sflag, size = 0x8, scoped, tag = 'scoped memory for tpu_custom_call.1']
    #allocation12 [shape = 's32[2]{0}', space=sflag, size = 0x8, scoped, tag = 'scoped memory for tpu_custom_call.1']
    #allocation13 [shape = 'u8[32768]{0}', space=vmem, size = 0x8000, scoped, tag = 'input window, operand 4']
    #allocation14 [shape = 's32[2]{0}', space=sflag, size = 0x8, scoped, tag = 'scoped memory for tpu_custom_call.1']
    #allocation15 [shape = 'u8[32768]{0}', space=vmem, size = 0x8000, scoped, tag = 'input window, operand 5']
    #allocation16 [shape = 'u8[32768]{0}', space=vmem, size = 0x8000, scoped, tag = 'output window, operand 0']
    %14 = vsyncpa [#allocation11], 0
    %s15 = scalar_lea.sflag [#allocation11], 1
    %16 = vsyncpa %s15, 0
    %17 = vsyncpa [#allocation14], 0
    %s18 = scalar_lea.sflag [#allocation14], 1
    %19 = vsyncpa %s18, 0
    %20 = vsyncpa [#allocation12], 0
    %s21 = scalar_lea.sflag [#allocation12], 1
    %22 = vsyncpa %s21, 0
    loop: start=0, step=1, limit=4
    $region2: #{tpu_custom_call.1} parent=1 // loop_pre_header
      _
    $region3: #{tpu_custom_call.1} parent=1 // loop_header
      %s24 = sphi 0, %s28
      %p25 = scmp.ge.s32.totalorder %s24, 4
      %s31 = sphi 0, %s43
      %s32 = sphi 0, %s39
      %s33 = sphi 0, %s31
      %s34 = sphi 0, %s32
      %s35 = sphi 0, %s33
      %s36 = sphi 0, %s34
      %s50 = sphi 0, %s52
      %s53 = sphi 0, %s50
      %s54 = sphi 0, %s53
      %s70 = sphi 0, %s54
      %s80 = sphi 0, %s82
      %s83 = sphi 0, %s80
      %s84 = sphi 0, %s83
      %s100 = sphi 0, %s84
      %s110 = sphi 0, %s112
      %s113 = sphi 0, %s110
      %s114 = sphi 0, %s113
      %s130 = sphi 0, %s114
      %s140 = sphi 0, %s142
      %s143 = sphi 0, %s140
      %s144 = sphi 0, %s143
      %s160 = sphi 0, %s144
    $region4: #{tpu_custom_call.1} parent=1 // loop_header_branch
      %27 = sbr.rel (%p25) target = $region8
    $region5: #{tpu_custom_call.1} parent=1 // loop_body
      %s29 = ssub.s32 %s24, 1
      %s30 = ssub.s32 %s24, 2
      %s37 = sadd.s32 1, %s32
      %p38 = scmp.ge.s32.totalorder %s37, 1
      %s39 = scalar_select %p38, 0, %s37
      %s40 = sadd.s32 1, %s31
      %s41 = scalar_select %p38, %s40, %s31
      %p42 = scmp.ge.s32.totalorder %s41, 2
      %s43 = scalar_select %p42, 0, %s41
      %s44 = sld [smem:[#allocation7 + %s32]]
      %s45 = sld [smem:[#allocation7 + %s39]]
      %s46 = ssub.s32 %s31, %s43
      %s47 = ssub.s32 %s44, %s45
      %s48 = sor.u32 %s46, %s47
      %p49 = scmp.eq.s32.totalorder %s48, 0
      %s51 = sadd.s32 %s50, 1
      %s52 = scalar_select %p49, %s50, %s51
      %p55 = pneg %p49
      %p56 = scmp.eq.s32.totalorder %s24, 1
      %p57 = por %p55, %p56
      %p58 = scmp.ne.s32.totalorder %s50, %s53
      %p59 = scmp.eq.s32.totalorder %s24, 0
      %p60 = por %p58, %p59
      %p61 = scmp.ne.s32.totalorder %s50, %s53
      %p62 = scmp.eq.s32.totalorder %s29, 1
      %p63 = por %p61, %p62
      %p64 = scmp.ne.s32.totalorder %s53, %s54
      %p65 = scmp.eq.s32.totalorder %s29, 0
      %p66 = por %p64, %p65
      %p67 = scmp.ne.s32.totalorder %s53, %s54
      %p68 = scmp.eq.s32.totalorder %s30, 1
      %p69 = por %p67, %p68
      %p71 = scmp.ne.s32.totalorder %s54, %s70
      %p72 = scmp.eq.s32.totalorder %s30, 0
      %p73 = por %p71, %p72
      %s74 = sld [smem:[#allocation8 + %s32]]
      %s75 = sld [smem:[#allocation8 + %s39]]
      %s76 = ssub.s32 %s31, %s43
      %s77 = ssub.s32 %s74, %s75
      %s78 = sor.u32 %s76, %s77
      %p79 = scmp.eq.s32.totalorder %s78, 0
      %s81 = sadd.s32 %s80, 1
      %s82 = scalar_select %p79, %s80, %s81
      %p85 = pneg %p79
      %p86 = scmp.eq.s32.totalorder %s24, 1
      %p87 = por %p85, %p86
      %p88 = scmp.ne.s32.totalorder %s80, %s83
      %p89 = scmp.eq.s32.totalorder %s24, 0
      %p90 = por %p88, %p89
      %p91 = scmp.ne.s32.totalorder %s80, %s83
      %p92 = scmp.eq.s32.totalorder %s29, 1
      %p93 = por %p91, %p92
      %p94 = scmp.ne.s32.totalorder %s83, %s84
      %p95 = scmp.eq.s32.totalorder %s29, 0
      %p96 = por %p94, %p95
      %p97 = scmp.ne.s32.totalorder %s83, %s84
      %p98 = scmp.eq.s32.totalorder %s30, 1
      %p99 = por %p97, %p98
      %p101 = scmp.ne.s32.totalorder %s84, %s100
      %p102 = scmp.eq.s32.totalorder %s30, 0
      %p103 = por %p101, %p102
      %s104 = sld [smem:[#allocation8 + %s32]]
      %s105 = sld [smem:[#allocation8 + %s39]]
      %s106 = ssub.s32 %s31, %s43
      %s107 = ssub.s32 %s104, %s105
      %s108 = sor.u32 %s106, %s107
      %p109 = scmp.eq.s32.totalorder %s108, 0
      %s111 = sadd.s32 %s110, 1
      %s112 = scalar_select %p109, %s110, %s111
      %p115 = pneg %p109
      %p116 = scmp.eq.s32.totalorder %s24, 1
      %p117 = por %p115, %p116
      %p118 = scmp.ne.s32.totalorder %s110, %s113
      %p119 = scmp.eq.s32.totalorder %s24, 0
      %p120 = por %p118, %p119
      %p121 = scmp.ne.s32.totalorder %s110, %s113
      %p122 = scmp.eq.s32.totalorder %s29, 1
      %p123 = por %p121, %p122
      %p124 = scmp.ne.s32.totalorder %s113, %s114
      %p125 = scmp.eq.s32.totalorder %s29, 0
      %p126 = por %p124, %p125
      %p127 = scmp.ne.s32.totalorder %s113, %s114
      %p128 = scmp.eq.s32.totalorder %s30, 1
      %p129 = por %p127, %p128
      %p131 = scmp.ne.s32.totalorder %s114, %s130
      %p132 = scmp.eq.s32.totalorder %s30, 0
      %p133 = por %p131, %p132
      %s134 = sld [smem:[#allocation7 + %s32]]
      %s135 = sld [smem:[#allocation7 + %s39]]
      %s136 = ssub.s32 %s31, %s43
      %s137 = ssub.s32 %s134, %s135
      %s138 = sor.u32 %s136, %s137
      %p139 = scmp.eq.s32.totalorder %s138, 0
      %s141 = sadd.s32 %s140, 1
      %s142 = scalar_select %p139, %s140, %s141
      %p145 = pneg %p139
      %p146 = scmp.eq.s32.totalorder %s24, 1
      %p147 = por %p145, %p146
      %p148 = scmp.ne.s32.totalorder %s140, %s143
      %p149 = scmp.eq.s32.totalorder %s24, 0
      %p150 = por %p148, %p149
      %p151 = scmp.ne.s32.totalorder %s140, %s143
      %p152 = scmp.eq.s32.totalorder %s29, 1
      %p153 = por %p151, %p152
      %p154 = scmp.ne.s32.totalorder %s143, %s144
      %p155 = scmp.eq.s32.totalorder %s29, 0
      %p156 = por %p154, %p155
      %p157 = scmp.ne.s32.totalorder %s143, %s144
      %p158 = scmp.eq.s32.totalorder %s30, 1
      %p159 = por %p157, %p158
      %p161 = scmp.ne.s32.totalorder %s144, %s160
      %p162 = scmp.eq.s32.totalorder %s30, 0
      %p163 = por %p161, %p162
      %p164 = scmp.le.s32.totalorder 1, %s24
      %p165 = scmp.lt.s32.totalorder %s24, 3
      %p166 = pnand %p164, %p165
      %p167 = pneg %p166
      // Predicated region
      $region9: #{tpu_custom_call.1} parent=5 // pred_check
        _
      $region10: #{tpu_custom_call.1} parent=5 // pred_check_branch
        %169 = sbr.rel (%p166) target = $region12
      $region11: #{tpu_custom_call.1} parent=5 // pred_region
        %s170 = ssub.s32 %s24, 1
      $region12: #{tpu_custom_call.1} parent=5 // pred_fallthru
        _
      %p171 = scmp.lt.s32.totalorder %s24, 2
      // Predicated region
      $region13: #{tpu_custom_call.1} parent=5 // pred_check
        %p172 = pneg %p171
      $region14: #{tpu_custom_call.1} parent=5 // pred_check_branch
        %174 = sbr.rel (%p172) target = $region16
      $region15: #{tpu_custom_call.1} parent=5 // pred_region
        // Predicated region
        $region17: #{tpu_custom_call.1} parent=15 // pred_check
          %p175 = pneg %p60
        $region18: #{tpu_custom_call.1} parent=15 // pred_check_branch
          %177 = sbr.rel (%p175) target = $region20
        $region19: #{tpu_custom_call.1} parent=15 // pred_region
          %s178 = sand.u32 %s50, 1
          %s179 = scalar_lea.sflag [#allocation11], %s178
          %s180 = sand.u32 %s50, 1
          %s181 = smul.addr %s180, 32
          %s182 = scalar_lea.vmem [#allocation10], %s181
          %s183 = sld [smem:[#allocation7 + %s32]]
          %s184 = smul.u32 4, %s31
          %s186 = ssub.s32 512, 512
          %187 = vsyncadd %s179, %s186
          %s188 = sadd.s32 %s183, %s184
          %s189 = smul.addr %s188, 128
          %s190 = scalar_lea.hbm %s3, %s189
          %s191 = sshll.u32 %s182, 4
          %s192 = int_to_ptr.vmem [resolvable:$true] %s191
          %197 = dma.hbm_to_vmem [thread:$0]  %s190, 512, %s192, %s179, 128, 128, 8
        $region20: #{tpu_custom_call.1} parent=15 // pred_fallthru
          _
        // Predicated region
        $region21: #{tpu_custom_call.1} parent=15 // pred_check
          %p198 = pneg %p90
        $region22: #{tpu_custom_call.1} parent=15 // pred_check_branch
          %200 = sbr.rel (%p198) target = $region24
        $region23: #{tpu_custom_call.1} parent=15 // pred_region
          %s201 = sand.u32 %s24, 1
          %s202 = scalar_lea.sflag [#allocation14], %s201
          %s203 = sand.u32 %s80, 1
          %s204 = smul.addr %s203, 32
          %s205 = scalar_lea.vmem [#allocation13], %s204
          %s206 = sld [smem:[#allocation8 + %s32]]
          %s207 = smul.u32 4, %s31
          %s209 = ssub.s32 512, 512
          %210 = vsyncadd %s202, %s209
          %s211 = sadd.s32 %s206, %s207
          %s212 = smul.addr %s211, 128
          %s213 = scalar_lea.hbm %s4, %s212
          %s214 = sshll.u32 %s205, 4
          %s215 = int_to_ptr.vmem [resolvable:$true] %s214
          %220 = dma.hbm_to_vmem [thread:$0]  %s213, 512, %s215, %s202, 128, 128, 8
        $region24: #{tpu_custom_call.1} parent=15 // pred_fallthru
          _
        // Predicated region
        $region25: #{tpu_custom_call.1} parent=15 // pred_check
          %p221 = pneg %p120
        $region26: #{tpu_custom_call.1} parent=15 // pred_check_branch
          %223 = sbr.rel (%p221) target = $region28
        $region27: #{tpu_custom_call.1} parent=15 // pred_region
          %s224 = sand.u32 %s24, 1
          %s225 = scalar_lea.sflag [#allocation14], %s224
          %s226 = sand.u32 %s110, 1
          %s227 = smul.addr %s226, 32
          %s228 = scalar_lea.vmem [#allocation15], %s227
          %s229 = sld [smem:[#allocation8 + %s32]]
          %s230 = smul.u32 4, %s31
          %s232 = ssub.s32 512, 512
          %233 = vsyncadd %s225, %s232
          %s234 = sadd.s32 %s229, %s230
          %s235 = smul.addr %s234, 128
          %s236 = scalar_lea.hbm %s5, %s235
          %s237 = sshll.u32 %s228, 4
          %s238 = int_to_ptr.vmem [resolvable:$true] %s237
          %243 = dma.hbm_to_vmem [thread:$0]  %s236, 512, %s238, %s225, 128, 128, 8
        $region28: #{tpu_custom_call.1} parent=15 // pred_fallthru
          _
      $region16: #{tpu_custom_call.1} parent=5 // pred_fallthru
        _
      %p244 = scmp.le.s32.totalorder 1, %s24
      %p245 = scmp.lt.s32.totalorder %s24, 3
      %p246 = pnand %p244, %p245
      %p247 = pneg %p246
      // Predicated region
      $region29: #{tpu_custom_call.1} parent=5 // pred_check
        _
      $region30: #{tpu_custom_call.1} parent=5 // pred_check_branch
        %249 = sbr.rel (%p246) target = $region32
      $region31: #{tpu_custom_call.1} parent=5 // pred_region
        %s250 = ssub.s32 %s24, 1
        %s251 = sand.u32 %s53, 1
        %s252 = scalar_lea.sflag [#allocation11], %s251
        %s253 = sand.u32 %s53, 1
        %s254 = smul.addr %s253, 32
        %s255 = scalar_lea.vmem [#allocation10], %s254
        // Predicated region
        $region33: #{tpu_custom_call.1} parent=31 // pred_check
          %p256 = pneg %p66
        $region34: #{tpu_custom_call.1} parent=31 // pred_check_branch
          %258 = sbr.rel (%p256) target = $region36
        $region35: #{tpu_custom_call.1} parent=31 // pred_region
          %259 = dma.done %s252, 512
        $region36: #{tpu_custom_call.1} parent=31 // pred_fallthru
          _
        %s260 = sand.u32 %s29, 1
        %s261 = scalar_lea.sflag [#allocation14], %s260
        %s262 = sand.u32 %s83, 1
        %s263 = smul.addr %s262, 32
        %s264 = scalar_lea.vmem [#allocation13], %s263
        // Predicated region
        $region37: #{tpu_custom_call.1} parent=31 // pred_check
          %p265 = pneg %p96
        $region38: #{tpu_custom_call.1} parent=31 // pred_check_branch
          %267 = sbr.rel (%p265) target = $region40
        $region39: #{tpu_custom_call.1} parent=31 // pred_region
          %268 = dma.done %s261, 512
        $region40: #{tpu_custom_call.1} parent=31 // pred_fallthru
          _
        %s269 = sand.u32 %s29, 1
        %s270 = scalar_lea.sflag [#allocation14], %s269
        %s271 = sand.u32 %s113, 1
        %s272 = smul.addr %s271, 32
        %s273 = scalar_lea.vmem [#allocation15], %s272
        // Predicated region
        $region41: #{tpu_custom_call.1} parent=31 // pred_check
          %p274 = pneg %p126
        $region42: #{tpu_custom_call.1} parent=31 // pred_check_branch
          %276 = sbr.rel (%p274) target = $region44
        $region43: #{tpu_custom_call.1} parent=31 // pred_region
          %277 = dma.done %s270, 512
        $region44: #{tpu_custom_call.1} parent=31 // pred_fallthru
          _
        %s278 = sand.u32 %s53, 1
        %s279 = scalar_lea.sflag [#allocation11], %s278
        %s280 = sand.u32 %s53, 1
        %s281 = smul.addr %s280, 32
        %s282 = scalar_lea.vmem [#allocation10], %s281
        %p283 = pneg %p66
        %p284 = pneg %p63
        %s285 = sand.u32 %s29, 1
        %s286 = scalar_lea.sflag [#allocation14], %s285
        %s287 = sand.u32 %s83, 1
        %s288 = smul.addr %s287, 32
        %s289 = scalar_lea.vmem [#allocation13], %s288
        %p290 = pneg %p96
        %p291 = pneg %p93
        %s292 = sand.u32 %s29, 1
        %s293 = scalar_lea.sflag [#allocation14], %s292
        %s294 = sand.u32 %s113, 1
        %s295 = smul.addr %s294, 32
        %s296 = scalar_lea.vmem [#allocation15], %s295
        %p297 = pneg %p126
        %p298 = pneg %p123
        %p299 = pneg %p156
        %p300 = pneg %p153
        %s301 = sand.u32 %s143, 1
        %s302 = scalar_lea.sflag [#allocation12], %s301
        %s303 = sand.u32 %s143, 1
        %s304 = smul.addr %s303, 32
        %s305 = scalar_lea.vmem [#allocation16], %s304
        %s306 = sld [smem:[#allocation7 + %s34]]
        %s307 = smul.u32 4, %s33
        %s308 = sld [smem:[#allocation8 + %s34]]
        %s309 = smul.u32 4, %s33
        %s310 = sld [smem:[#allocation8 + %s34]]
        %s311 = smul.u32 4, %s33
        %s312 = sld [smem:[#allocation7 + %s34]]
        %s313 = smul.u32 4, %s33
        %s314 = sld [smem:[#allocation7 + %s34]]
        %s315 = sld [smem:[#allocation8 + %s34]]
        %s316 = sld [smem:[#allocation9 + %s34]]
        %p317 = scmp.eq.s32.totalorder %s316, 1
        %p318 = scmp.eq.s32.totalorder %s315, 0
        // Predicated region
        $region45: #{tpu_custom_call.1} parent=31 // pred_check
          %p319 = pneg %p318
        $region46: #{tpu_custom_call.1} parent=31 // pred_check_branch
          %321 = sbr.rel (%p319) target = $region48
        $region47: #{tpu_custom_call.1} parent=31 // pred_region
          %v322 = vld [vmem:[%s255] sm:$0xff]
          %v323 = vld [vmem:[%s255 + $0x8] sm:$0xff]
          %v324 = vld [vmem:[%s255 + $0x10] sm:$0xff]
          %v325 = vld [vmem:[%s255 + $0x18] sm:$0xff]
          %v326 = vmul.f32 %v322, 0.17677669
          %v327 = vmul.f32 %v323, 0.17677669
          %v328 = vmul.f32 %v324, 0.17677669
          %v329 = vmul.f32 %v325, 0.17677669
          %vm330 = vcmask 261120
          %331 = vst.msk [vmem:[#allocation2] sm:$0xff] %vm330, %v326
          %332 = vst.msk [vmem:[#allocation2 + $0x8] sm:$0xff] %vm330, %v327
          %333 = vst.msk [vmem:[#allocation2 + $0x10] sm:$0xff] %vm330, %v328
          %334 = vst.msk [vmem:[#allocation2 + $0x18] sm:$0xff] %vm330, %v329
          %vm335 = vcmask 7168
          %336 = vst.msk [vmem:[#allocation3] sm:$0xff] %vm335, -inf
          %337 = vst.msk [vmem:[#allocation3 + $0x8] sm:$0xff] %vm335, -inf
          %338 = vst.msk [vmem:[#allocation3 + $0x10] sm:$0xff] %vm335, -inf
          %339 = vst.msk [vmem:[#allocation3 + $0x18] sm:$0xff] %vm335, -inf
          %340 = vst.msk [vmem:[#allocation4] sm:$0xff] %vm335, 0.0
          %341 = vst.msk [vmem:[#allocation4 + $0x8] sm:$0xff] %vm335, 0.0
          %342 = vst.msk [vmem:[#allocation4 + $0x10] sm:$0xff] %vm335, 0.0
          %343 = vst.msk [vmem:[#allocation4 + $0x18] sm:$0xff] %vm335, 0.0
          %344 = vst.msk [vmem:[#allocation5] sm:$0xff] %vm330, 0.0
          %345 = vst.msk [vmem:[#allocation5 + $0x8] sm:$0xff] %vm330, 0.0
          %346 = vst.msk [vmem:[#allocation5 + $0x10] sm:$0xff] %vm330, 0.0
          %347 = vst.msk [vmem:[#allocation5 + $0x18] sm:$0xff] %vm330, 0.0
        $region48: #{tpu_custom_call.1} parent=31 // pred_fallthru
          _
        %v348 = vld [vmem:[#allocation2] sm:$0xff]
        %v349 = vld [vmem:[#allocation2 + $0x8] sm:$0xff]
        %v350 = vld [vmem:[#allocation2 + $0x10] sm:$0xff]
        %v351 = vld [vmem:[#allocation2 + $0x18] sm:$0xff]
        %v352 = vld [vmem:[%s264] sm:$0xff]
        %v353 = vld [vmem:[%s264 + $0x8] sm:$0xff]
        %v354 = vld [vmem:[%s264 + $0x10] sm:$0xff]
        %v355 = vld [vmem:[%s264 + $0x18] sm:$0xff]
        %vm356 = vcmask 261120
        %v358 = vsel %vm356, %v348, 0
        %v361 = vsel %vm356, %v352, 0
        %363 = vmatprep.subr.mxu0 0.0
        %364 = vmatpush1.xpose.msra.mxu0 %v361
        %365 = vmatprep.subr.mxu0 0.0
        %366 = vmatpush1.xpose.msra.mxu0 0.0
        %367 = vmatprep.subr.mxu0 0.0
        %368 = vmatpush1.xpose.msra.mxu0 0.0
        %369 = vmatprep.subr.mxu0 0.0
        %370 = vmatpush1.xpose.msra.mxu0 0.0
        %371 = vmatprep.subr.mxu0 0.0
        %372 = vmatpush1.xpose.msra.mxu0 0.0
        %373 = vmatprep.subr.mxu0 0.0
        %374 = vmatpush1.xpose.msra.mxu0 0.0
        %375 = vmatprep.subr.mxu0 0.0
        %376 = vmatpush1.xpose.msra.mxu0 0.0
        %377 = vmatprep.subr.mxu0 0.0
        %378 = vmatpush1.xpose.msra.mxu0 0.0
        %379 = vmatprep.subr.mxu0 0.0
        %380 = vmatpush1.xpose.msra.mxu0 0.0
        %381 = vmatprep.subr.mxu0 0.0
        %382 = vmatpush1.xpose.msra.mxu0 0.0
        %383 = vmatprep.subr.mxu0 0.0
        %384 = vmatpush1.xpose.msra.mxu0 0.0
        %385 = vmatprep.subr.mxu0 0.0
        %386 = vmatpush1.xpose.msra.mxu0 0.0
        %387 = vmatprep.subr.mxu0 0.0
        %388 = vmatpush1.xpose.msra.mxu0 0.0
        %389 = vmatprep.subr.mxu0 0.0
        %390 = vmatpush1.xpose.msra.mxu0 0.0
        %391 = vmatprep.subr.mxu0 0.0
        %392 = vmatpush1.xpose.msra.mxu0 0.0
        %393 = vmatprep.subr.mxu0 0.0
        %394 = vmatpush1.xpose.msra.mxu0 0.0
        %395 = vmatprep.subr.mxu0 0.0
        %396 = vmatpush1.xpose.msra.mxu0 0.0
        %397 = vmatprep.subr.mxu0 0.0
        %398 = vmatpush1.xpose.msra.mxu0 0.0
        %399 = vmatprep.subr.mxu0 0.0
        %400 = vmatpush1.xpose.msra.mxu0 0.0
        %401 = vmatprep.subr.mxu0 0.0
        %402 = vmatpush1.xpose.msra.mxu0 0.0
        %403 = vmatprep.subr.mxu0 0.0
        %404 = vmatpush1.xpose.msra.mxu0 0.0
        %405 = vmatprep.subr.mxu0 0.0
        %406 = vmatpush1.xpose.msra.mxu0 0.0
        %407 = vmatprep.subr.mxu0 0.0
        %408 = vmatpush1.xpose.msra.mxu0 0.0
        %409 = vmatprep.subr.mxu0 0.0
        %410 = vmatpush1.xpose.msra.mxu0 0.0
        %411 = vmatprep.subr.mxu0 0.0
        %412 = vmatpush1.xpose.msra.mxu0 0.0
        %413 = vmatprep.subr.mxu0 0.0
        %414 = vmatpush1.xpose.msra.mxu0 0.0
        %415 = vmatprep.subr.mxu0 0.0
        %416 = vmatpush1.xpose.msra.mxu0 0.0
        %417 = vmatprep.subr.mxu0 0.0
        %418 = vmatpush1.xpose.msra.mxu0 0.0
        %419 = vmatprep.subr.mxu0 0.0
        %420 = vmatpush1.xpose.msra.mxu0 0.0
        %421 = vmatprep.subr.mxu0 0.0
        %422 = vmatpush1.xpose.msra.mxu0 0.0
        %423 = vmatprep.subr.mxu0 0.0
        %424 = vmatpush1.xpose.msra.mxu0 0.0
        %425 = vmatprep.subr.mxu0 0.0
        %426 = vmatpush1.xpose.msra.mxu0 0.0
        %427 = vmatprep.mubr.f32.mxu0 0.0
        %428 = vmatmul.mubr.f32.gmra.mrb[0].mxu0 %v358
        %v429 = vpop.f32.mrb[0].mxu0
        %v430 = vadd.f32 0.0, %v429
        %v431 = vpop.f32.mrb[0].mxu0
        %432 = vdwg.mxu0
        %v434 = vsel %vm356, %v349, 0
        %v437 = vsel %vm356, %v353, 0
        %439 = vmatprep.subr.mxu0 0.0
        %440 = vmatpush1.xpose.msra.mxu0 %v437
        %441 = vmatprep.subr.mxu0 0.0
        %442 = vmatpush1.xpose.msra.mxu0 0.0
        %443 = vmatprep.subr.mxu0 0.0
        %444 = vmatpush1.xpose.msra.mxu0 0.0
        %445 = vmatprep.subr.mxu0 0.0
        %446 = vmatpush1.xpose.msra.mxu0 0.0
        %447 = vmatprep.subr.mxu0 0.0
        %448 = vmatpush1.xpose.msra.mxu0 0.0
        %449 = vmatprep.subr.mxu0 0.0
        %450 = vmatpush1.xpose.msra.mxu0 0.0
        %451 = vmatprep.subr.mxu0 0.0
        %452 = vmatpush1.xpose.msra.mxu0 0.0
        %453 = vmatprep.subr.mxu0 0.0
        %454 = vmatpush1.xpose.msra.mxu0 0.0
        %455 = vmatprep.subr.mxu0 0.0
        %456 = vmatpush1.xpose.msra.mxu0 0.0
        %457 = vmatprep.subr.mxu0 0.0
        %458 = vmatpush1.xpose.msra.mxu0 0.0
        %459 = vmatprep.subr.mxu0 0.0
        %460 = vmatpush1.xpose.msra.mxu0 0.0
        %461 = vmatprep.subr.mxu0 0.0
        %462 = vmatpush1.xpose.msra.mxu0 0.0
        %463 = vmatprep.subr.mxu0 0.0
        %464 = vmatpush1.xpose.msra.mxu0 0.0
        %465 = vmatprep.subr.mxu0 0.0
        %466 = vmatpush1.xpose.msra.mxu0 0.0
        %467 = vmatprep.subr.mxu0 0.0
        %468 = vmatpush1.xpose.msra.mxu0 0.0
        %469 = vmatprep.subr.mxu0 0.0
        %470 = vmatpush1.xpose.msra.mxu0 0.0
        %471 = vmatprep.subr.mxu0 0.0
        %472 = vmatpush1.xpose.msra.mxu0 0.0
        %473 = vmatprep.subr.mxu0 0.0
        %474 = vmatpush1.xpose.msra.mxu0 0.0
        %475 = vmatprep.subr.mxu0 0.0
        %476 = vmatpush1.xpose.msra.mxu0 0.0
        %477 = vmatprep.subr.mxu0 0.0
        %478 = vmatpush1.xpose.msra.mxu0 0.0
        %479 = vmatprep.subr.mxu0 0.0
        %480 = vmatpush1.xpose.msra.mxu0 0.0
        %481 = vmatprep.subr.mxu0 0.0
        %482 = vmatpush1.xpose.msra.mxu0 0.0
        %483 = vmatprep.subr.mxu0 0.0
        %484 = vmatpush1.xpose.msra.mxu0 0.0
        %485 = vmatprep.subr.mxu0 0.0
        %486 = vmatpush1.xpose.msra.mxu0 0.0
        %487 = vmatprep.subr.mxu0 0.0
        %488 = vmatpush1.xpose.msra.mxu0 0.0
        %489 = vmatprep.subr.mxu0 0.0
        %490 = vmatpush1.xpose.msra.mxu0 0.0
        %491 = vmatprep.subr.mxu0 0.0
        %492 = vmatpush1.xpose.msra.mxu0 0.0
        %493 = vmatprep.subr.mxu0 0.0
        %494 = vmatpush1.xpose.msra.mxu0 0.0
        %495 = vmatprep.subr.mxu0 0.0
        %496 = vmatpush1.xpose.msra.mxu0 0.0
        %497 = vmatprep.subr.mxu0 0.0
        %498 = vmatpush1.xpose.msra.mxu0 0.0
        %499 = vmatprep.subr.mxu0 0.0
        %500 = vmatpush1.xpose.msra.mxu0 0.0
        %501 = vmatprep.subr.mxu0 0.0
        %502 = vmatpush1.xpose.msra.mxu0 0.0
        %503 = vmatprep.mubr.f32.mxu0 0.0
        %504 = vmatmul.mubr.f32.gmra.mrb[0].mxu0 %v434
        %v505 = vpop.f32.mrb[0].mxu0
        %v506 = vadd.f32 0.0, %v505
        %v507 = vpop.f32.mrb[0].mxu0
        %508 = vdwg.mxu0
        %v510 = vsel %vm356, %v350, 0
        %v513 = vsel %vm356, %v354, 0
        %515 = vmatprep.subr.mxu0 0.0
        %516 = vmatpush1.xpose.msra.mxu0 %v513
        %517 = vmatprep.subr.mxu0 0.0
        %518 = vmatpush1.xpose.msra.mxu0 0.0
        %519 = vmatprep.subr.mxu0 0.0
        %520 = vmatpush1.xpose.msra.mxu0 0.0
        %521 = vmatprep.subr.mxu0 0.0
        %522 = vmatpush1.xpose.msra.mxu0 0.0
        %523 = vmatprep.subr.mxu0 0.0
        %524 = vmatpush1.xpose.msra.mxu0 0.0
        %525 = vmatprep.subr.mxu0 0.0
        %526 = vmatpush1.xpose.msra.mxu0 0.0
        %527 = vmatprep.subr.mxu0 0.0
        %528 = vmatpush1.xpose.msra.mxu0 0.0
        %529 = vmatprep.subr.mxu0 0.0
        %530 = vmatpush1.xpose.msra.mxu0 0.0
        %531 = vmatprep.subr.mxu0 0.0
        %532 = vmatpush1.xpose.msra.mxu0 0.0
        %533 = vmatprep.subr.mxu0 0.0
        %534 = vmatpush1.xpose.msra.mxu0 0.0
        %535 = vmatprep.subr.mxu0 0.0
        %536 = vmatpush1.xpose.msra.mxu0 0.0
        %537 = vmatprep.subr.mxu0 0.0
        %538 = vmatpush1.xpose.msra.mxu0 0.0
        %539 = vmatprep.subr.mxu0 0.0
        %540 = vmatpush1.xpose.msra.mxu0 0.0
        %541 = vmatprep.subr.mxu0 0.0
        %542 = vmatpush1.xpose.msra.mxu0 0.0
        %543 = vmatprep.subr.mxu0 0.0
        %544 = vmatpush1.xpose.msra.mxu0 0.0
        %545 = vmatprep.subr.mxu0 0.0
        %546 = vmatpush1.xpose.msra.mxu0 0.0
        %547 = vmatprep.subr.mxu0 0.0
        %548 = vmatpush1.xpose.msra.mxu0 0.0
        %549 = vmatprep.subr.mxu0 0.0
        %550 = vmatpush1.xpose.msra.mxu0 0.0
        %551 = vmatprep.subr.mxu0 0.0
        %552 = vmatpush1.xpose.msra.mxu0 0.0
        %553 = vmatprep.subr.mxu0 0.0
        %554 = vmatpush1.xpose.msra.mxu0 0.0
        %555 = vmatprep.subr.mxu0 0.0
        %556 = vmatpush1.xpose.msra.mxu0 0.0
        %557 = vmatprep.subr.mxu0 0.0
        %558 = vmatpush1.xpose.msra.mxu0 0.0
        %559 = vmatprep.subr.mxu0 0.0
        %560 = vmatpush1.xpose.msra.mxu0 0.0
        %561 = vmatprep.subr.mxu0 0.0
        %562 = vmatpush1.xpose.msra.mxu0 0.0
        %563 = vmatprep.subr.mxu0 0.0
        %564 = vmatpush1.xpose.msra.mxu0 0.0
        %565 = vmatprep.subr.mxu0 0.0
        %566 = vmatpush1.xpose.msra.mxu0 0.0
        %567 = vmatprep.subr.mxu0 0.0
        %568 = vmatpush1.xpose.msra.mxu0 0.0
        %569 = vmatprep.subr.mxu0 0.0
        %570 = vmatpush1.xpose.msra.mxu0 0.0
        %571 = vmatprep.subr.mxu0 0.0
        %572 = vmatpush1.xpose.msra.mxu0 0.0
        %573 = vmatprep.subr.mxu0 0.0
        %574 = vmatpush1.xpose.msra.mxu0 0.0
        %575 = vmatprep.subr.mxu0 0.0
        %576 = vmatpush1.xpose.msra.mxu0 0.0
        %577 = vmatprep.subr.mxu0 0.0
        %578 = vmatpush1.xpose.msra.mxu0 0.0
        %579 = vmatprep.mubr.f32.mxu0 0.0
        %580 = vmatmul.mubr.f32.gmra.mrb[0].mxu0 %v510
        %v581 = vpop.f32.mrb[0].mxu0
        %v582 = vadd.f32 0.0, %v581
        %v583 = vpop.f32.mrb[0].mxu0
        %584 = vdwg.mxu0
        %v586 = vsel %vm356, %v351, 0
        %v589 = vsel %vm356, %v355, 0
        %591 = vmatprep.subr.mxu0 0.0
        %592 = vmatpush1.xpose.msra.mxu0 %v589
        %593 = vmatprep.subr.mxu0 0.0
        %594 = vmatpush1.xpose.msra.mxu0 0.0
        %595 = vmatprep.subr.mxu0 0.0
        %596 = vmatpush1.xpose.msra.mxu0 0.0
        %597 = vmatprep.subr.mxu0 0.0
        %598 = vmatpush1.xpose.msra.mxu0 0.0
        %599 = vmatprep.subr.mxu0 0.0
        %600 = vmatpush1.xpose.msra.mxu0 0.0
        %601 = vmatprep.subr.mxu0 0.0
        %602 = vmatpush1.xpose.msra.mxu0 0.0
        %603 = vmatprep.subr.mxu0 0.0
        %604 = vmatpush1.xpose.msra.mxu0 0.0
        %605 = vmatprep.subr.mxu0 0.0
        %606 = vmatpush1.xpose.msra.mxu0 0.0
        %607 = vmatprep.subr.mxu0 0.0
        %608 = vmatpush1.xpose.msra.mxu0 0.0
        %609 = vmatprep.subr.mxu0 0.0
        %610 = vmatpush1.xpose.msra.mxu0 0.0
        %611 = vmatprep.subr.mxu0 0.0
        %612 = vmatpush1.xpose.msra.mxu0 0.0
        %613 = vmatprep.subr.mxu0 0.0
        %614 = vmatpush1.xpose.msra.mxu0 0.0
        %615 = vmatprep.subr.mxu0 0.0
        %616 = vmatpush1.xpose.msra.mxu0 0.0
        %617 = vmatprep.subr.mxu0 0.0
        %618 = vmatpush1.xpose.msra.mxu0 0.0
        %619 = vmatprep.subr.mxu0 0.0
        %620 = vmatpush1.xpose.msra.mxu0 0.0
        %621 = vmatprep.subr.mxu0 0.0
        %622 = vmatpush1.xpose.msra.mxu0 0.0
        %623 = vmatprep.subr.mxu0 0.0
        %624 = vmatpush1.xpose.msra.mxu0 0.0
        %625 = vmatprep.subr.mxu0 0.0
        %626 = vmatpush1.xpose.msra.mxu0 0.0
        %627 = vmatprep.subr.mxu0 0.0
        %628 = vmatpush1.xpose.msra.mxu0 0.0
        %629 = vmatprep.subr.mxu0 0.0
        %630 = vmatpush1.xpose.msra.mxu0 0.0
        %631 = vmatprep.subr.mxu0 0.0
        %632 = vmatpush1.xpose.msra.mxu0 0.0
        %633 = vmatprep.subr.mxu0 0.0
        %634 = vmatpush1.xpose.msra.mxu0 0.0
        %635 = vmatprep.subr.mxu0 0.0
        %636 = vmatpush1.xpose.msra.mxu0 0.0
        %637 = vmatprep.subr.mxu0 0.0
        %638 = vmatpush1.xpose.msra.mxu0 0.0
        %639 = vmatprep.subr.mxu0 0.0
        %640 = vmatpush1.xpose.msra.mxu0 0.0
        %641 = vmatprep.subr.mxu0 0.0
        %642 = vmatpush1.xpose.msra.mxu0 0.0
        %643 = vmatprep.subr.mxu0 0.0
        %644 = vmatpush1.xpose.msra.mxu0 0.0
        %645 = vmatprep.subr.mxu0 0.0
        %646 = vmatpush1.xpose.msra.mxu0 0.0
        %647 = vmatprep.subr.mxu0 0.0
        %648 = vmatpush1.xpose.msra.mxu0 0.0
        %649 = vmatprep.subr.mxu0 0.0
        %650 = vmatpush1.xpose.msra.mxu0 0.0
        %651 = vmatprep.subr.mxu0 0.0
        %652 = vmatpush1.xpose.msra.mxu0 0.0
        %653 = vmatprep.subr.mxu0 0.0
        %654 = vmatpush1.xpose.msra.mxu0 0.0
        %655 = vmatprep.mubr.f32.mxu0 0.0
        %656 = vmatmul.mubr.f32.gmra.mrb[0].mxu0 %v586
        %v657 = vpop.f32.mrb[0].mxu0
        %v658 = vadd.f32 0.0, %v657
        %v659 = vpop.f32.mrb[0].mxu0
        %660 = vdwg.mxu0
        %s661 = smul.u32 %s315, 8
        %s662 = sadd.s32 %s661, 7
        %s663 = smul.u32 %s314, 8
        %p664 = scmp.gt.s32.totalorder %s662, %s663
        // Predicated region
        $region49: #{tpu_custom_call.1} parent=31 // pred_check
          %p665 = pneg %p664
        $region50: #{tpu_custom_call.1} parent=31 // pred_check_branch
          %667 = sbr.rel (%p665) target = $region52
        $region51: #{tpu_custom_call.1} parent=31 // pred_region
          %v668 = vlaneseq
          %v669 = vshrl.u32 %v668, 7
          %v670 = vstv %s663
          %v671 = vadd.s32 %v670, %v669
          %v672 = vlaneseq
          %v673 = vand.u32 %v672, 127
          %v674 = vstv %s661
          %v675 = vadd.s32 %v674, %v673
          %vm676 = vcmp.gt.s32.totalorder %v675, %v671
          %v677 = vsel %vm676, 1, 0
          %vm678 = vcmp.eq.s32.totalorder %v677, 1
          %v679 = vsel %vm678, -10000.0, %v430
          %v680 = vsel %vm678, -10000.0, %v506
          %v681 = vsel %vm678, -10000.0, %v582
          %v682 = vsel %vm678, -10000.0, %v658
          %v683 = vld [vmem:[#allocation3] sm:$0xff]
          %v684 = vld [vmem:[#allocation3 + $0x8] sm:$0xff]
          %v685 = vld [vmem:[#allocation3 + $0x10] sm:$0xff]
          %v686 = vld [vmem:[#allocation3 + $0x18] sm:$0xff]
          %vm687 = vcmask 64512
          %v688 = vsel %vm687, %v679, -inf
          %689 = vmax.xlane.f32.xlu0 %v688
          %v690 = vpop.xlane.xlu0 %689
          %v691 = vsel %vm687, %v680, -inf
          %692 = vmax.xlane.f32.xlu0 %v691
          %v693 = vpop.xlane.xlu0 %692
          %v694 = vsel %vm687, %v681, -inf
          %695 = vmax.xlane.f32.xlu0 %v694
          %v696 = vpop.xlane.xlu0 %695
          %v697 = vsel %vm687, %v682, -inf
          %698 = vmax.xlane.f32.xlu0 %v697
          %v699 = vpop.xlane.xlu0 %698
          %v700 = vmax.f32 %v683, %v690
          %v701 = vmax.f32 %v684, %v693
          %v702 = vmax.f32 %v685, %v696
          %v703 = vmax.f32 %v686, %v699
          %v704 = vsub.f32 %v683, %v700
          %v705 = vsub.f32 %v684, %v701
          %v706 = vsub.f32 %v685, %v702
          %v707 = vsub.f32 %v686, %v703
          %v708 = vmul.f32 %v704, 1.442695
          %v709 = vpow.pop %v708
          %v710 = vmul.f32 %v705, 1.442695
          %v711 = vpow.pop %v710
          %v712 = vmul.f32 %v706, 1.442695
          %v713 = vpow.pop %v712
          %v714 = vmul.f32 %v707, 1.442695
          %v715 = vpow.pop %v714
          %717 = vset.pattern.permute.xlu0 0
          %718 = vperm.xlu0 %717, %v700
          %v719 = vpop.permute.xlu0 %718
          %722 = vset.pattern.permute.xlu0 0
          %723 = vperm.xlu0 %722, %v701
          %v724 = vpop.permute.xlu0 %723
          %727 = vset.pattern.permute.xlu0 0
          %728 = vperm.xlu0 %727, %v702
          %v729 = vpop.permute.xlu0 %728
          %732 = vset.pattern.permute.xlu0 0
          %733 = vperm.xlu0 %732, %v703
          %v734 = vpop.permute.xlu0 %733
          %v736 = vsub.f32 %v679, %v719
          %v737 = vsub.f32 %v680, %v724
          %v738 = vsub.f32 %v681, %v729
          %v739 = vsub.f32 %v682, %v734
          %v740 = vmul.f32 %v736, 1.442695
          %v741 = vpow.pop %v740
          %v742 = vmul.f32 %v737, 1.442695
          %v743 = vpow.pop %v742
          %v744 = vmul.f32 %v738, 1.442695
          %v745 = vpow.pop %v744
          %v746 = vmul.f32 %v739, 1.442695
          %v747 = vpow.pop %v746
          %v748 = vld [vmem:[#allocation4] sm:$0xff]
          %v749 = vld [vmem:[#allocation4 + $0x8] sm:$0xff]
          %v750 = vld [vmem:[#allocation4 + $0x10] sm:$0xff]
          %v751 = vld [vmem:[#allocation4 + $0x18] sm:$0xff]
          %v752 = vmul.f32 %v709, %v748
          %v753 = vmul.f32 %v711, %v749
          %v754 = vmul.f32 %v713, %v750
          %v755 = vmul.f32 %v715, %v751
          %v756 = vsel %vm687, %v741, 0.0
          %757 = vadd.xlane.f32.xlu0 %v756
          %v758 = vpop.xlane.xlu0 %757
          %v759 = vsel %vm687, %v743, 0.0
          %760 = vadd.xlane.f32.xlu0 %v759
          %v761 = vpop.xlane.xlu0 %760
          %v762 = vsel %vm687, %v745, 0.0
          %763 = vadd.xlane.f32.xlu0 %v762
          %v764 = vpop.xlane.xlu0 %763
          %v765 = vsel %vm687, %v747, 0.0
          %766 = vadd.xlane.f32.xlu0 %v765
          %v767 = vpop.xlane.xlu0 %766
          %v768 = vadd.f32 %v752, %v758
          %v769 = vadd.f32 %v753, %v761
          %v770 = vadd.f32 %v754, %v764
          %v771 = vadd.f32 %v755, %v767
          %vm772 = vcmask 7168
          %773 = vst.msk [vmem:[#allocation4] sm:$0xff] %vm772, %v768
          %774 = vst.msk [vmem:[#allocation4 + $0x8] sm:$0xff] %vm772, %v769
          %775 = vst.msk [vmem:[#allocation4 + $0x10] sm:$0xff] %vm772, %v770
          %776 = vst.msk [vmem:[#allocation4 + $0x18] sm:$0xff] %vm772, %v771
          %v777 = vld [vmem:[#allocation5] sm:$0xff]
          %v778 = vld [vmem:[#allocation5 + $0x8] sm:$0xff]
          %v779 = vld [vmem:[#allocation5 + $0x10] sm:$0xff]
          %v780 = vld [vmem:[#allocation5 + $0x18] sm:$0xff]
          %782 = vset.pattern.permute.xlu0 0
          %783 = vperm.xlu0 %782, %v709
          %v784 = vpop.permute.xlu0 %783
          %787 = vset.pattern.permute.xlu0 0
          %788 = vperm.xlu0 %787, %v711
          %v789 = vpop.permute.xlu0 %788
          %792 = vset.pattern.permute.xlu0 0
          %793 = vperm.xlu0 %792, %v713
          %v794 = vpop.permute.xlu0 %793
          %797 = vset.pattern.permute.xlu0 0
          %798 = vperm.xlu0 %797, %v715
          %v799 = vpop.permute.xlu0 %798
          %v801 = vmul.f32 %v784, %v777
          %v802 = vmul.f32 %v789, %v778
          %v803 = vmul.f32 %v794, %v779
          %v804 = vmul.f32 %v799, %v780
          %v805 = vld [vmem:[%s273] sm:$0xff]
          %v806 = vld [vmem:[%s273 + $0x8] sm:$0xff]
          %v807 = vld [vmem:[%s273 + $0x10] sm:$0xff]
          %v808 = vld [vmem:[%s273 + $0x18] sm:$0xff]
          %v810 = vsel %vm687, %v741, 0
          %812 = vmatprep.subr.mxu0 0.0
          %813 = vmatpush1.msra.mxu0 %v805
          %814 = vmatprep.subr.mxu0 0.0
          %815 = vmatpush1.msra.mxu0 0.0
          %816 = vmatprep.subr.mxu0 0.0
          %817 = vmatpush1.msra.mxu0 0.0
          %818 = vmatprep.subr.mxu0 0.0
          %819 = vmatpush1.msra.mxu0 0.0
          %820 = vmatprep.subr.mxu0 0.0
          %821 = vmatpush1.msra.mxu0 0.0
          %822 = vmatprep.subr.mxu0 0.0
          %823 = vmatpush1.msra.mxu0 0.0
          %824 = vmatprep.subr.mxu0 0.0
          %825 = vmatpush1.msra.mxu0 0.0
          %826 = vmatprep.subr.mxu0 0.0
          %827 = vmatpush1.msra.mxu0 0.0
          %828 = vmatprep.subr.mxu0 0.0
          %829 = vmatpush1.msra.mxu0 0.0
          %830 = vmatprep.subr.mxu0 0.0
          %831 = vmatpush1.msra.mxu0 0.0
          %832 = vmatprep.subr.mxu0 0.0
          %833 = vmatpush1.msra.mxu0 0.0
          %834 = vmatprep.subr.mxu0 0.0
          %835 = vmatpush1.msra.mxu0 0.0
          %836 = vmatprep.subr.mxu0 0.0
          %837 = vmatpush1.msra.mxu0 0.0
          %838 = vmatprep.subr.mxu0 0.0
          %839 = vmatpush1.msra.mxu0 0.0
          %840 = vmatprep.subr.mxu0 0.0
          %841 = vmatpush1.msra.mxu0 0.0
          %842 = vmatprep.subr.mxu0 0.0
          %843 = vmatpush1.msra.mxu0 0.0
          %844 = vmatprep.subr.mxu0 0.0
          %845 = vmatpush1.msra.mxu0 0.0
          %846 = vmatprep.subr.mxu0 0.0
          %847 = vmatpush1.msra.mxu0 0.0
          %848 = vmatprep.subr.mxu0 0.0
          %849 = vmatpush1.msra.mxu0 0.0
          %850 = vmatprep.subr.mxu0 0.0
          %851 = vmatpush1.msra.mxu0 0.0
          %852 = vmatprep.subr.mxu0 0.0
          %853 = vmatpush1.msra.mxu0 0.0
          %854 = vmatprep.subr.mxu0 0.0
          %855 = vmatpush1.msra.mxu0 0.0
          %856 = vmatprep.subr.mxu0 0.0
          %857 = vmatpush1.msra.mxu0 0.0
          %858 = vmatprep.subr.mxu0 0.0
          %859 = vmatpush1.msra.mxu0 0.0
          %860 = vmatprep.subr.mxu0 0.0
          %861 = vmatpush1.msra.mxu0 0.0
          %862 = vmatprep.subr.mxu0 0.0
          %863 = vmatpush1.msra.mxu0 0.0
          %864 = vmatprep.subr.mxu0 0.0
          %865 = vmatpush1.msra.mxu0 0.0
          %866 = vmatprep.subr.mxu0 0.0
          %867 = vmatpush1.msra.mxu0 0.0
          %868 = vmatprep.subr.mxu0 0.0
          %869 = vmatpush1.msra.mxu0 0.0
          %870 = vmatprep.subr.mxu0 0.0
          %871 = vmatpush1.msra.mxu0 0.0
          %872 = vmatprep.subr.mxu0 0.0
          %873 = vmatpush1.msra.mxu0 0.0
          %874 = vmatprep.subr.mxu0 0.0
          %875 = vmatpush1.msra.mxu0 0.0
          %876 = vmatprep.mubr.f32.mxu0 0.0
          %877 = vmatmul.mubr.f32.gmra.mrb[0].mxu0 %v810
          %v878 = vpop.f32.mrb[0].mxu0
          %v879 = vadd.f32 0.0, %v878
          %v880 = vpop.f32.mrb[0].mxu0
          %881 = vdwg.mxu0
          %v883 = vsel %vm687, %v743, 0
          %885 = vmatprep.subr.mxu0 0.0
          %886 = vmatpush1.msra.mxu0 %v806
          %887 = vmatprep.subr.mxu0 0.0
          %888 = vmatpush1.msra.mxu0 0.0
          %889 = vmatprep.subr.mxu0 0.0
          %890 = vmatpush1.msra.mxu0 0.0
          %891 = vmatprep.subr.mxu0 0.0
          %892 = vmatpush1.msra.mxu0 0.0
          %893 = vmatprep.subr.mxu0 0.0
          %894 = vmatpush1.msra.mxu0 0.0
          %895 = vmatprep.subr.mxu0 0.0
          %896 = vmatpush1.msra.mxu0 0.0
          %897 = vmatprep.subr.mxu0 0.0
          %898 = vmatpush1.msra.mxu0 0.0
          %899 = vmatprep.subr.mxu0 0.0
          %900 = vmatpush1.msra.mxu0 0.0
          %901 = vmatprep.subr.mxu0 0.0
          %902 = vmatpush1.msra.mxu0 0.0
          %903 = vmatprep.subr.mxu0 0.0
          %904 = vmatpush1.msra.mxu0 0.0
          %905 = vmatprep.subr.mxu0 0.0
          %906 = vmatpush1.msra.mxu0 0.0
          %907 = vmatprep.subr.mxu0 0.0
          %908 = vmatpush1.msra.mxu0 0.0
          %909 = vmatprep.subr.mxu0 0.0
          %910 = vmatpush1.msra.mxu0 0.0
          %911 = vmatprep.subr.mxu0 0.0
          %912 = vmatpush1.msra.mxu0 0.0
          %913 = vmatprep.subr.mxu0 0.0
          %914 = vmatpush1.msra.mxu0 0.0
          %915 = vmatprep.subr.mxu0 0.0
          %916 = vmatpush1.msra.mxu0 0.0
          %917 = vmatprep.subr.mxu0 0.0
          %918 = vmatpush1.msra.mxu0 0.0
          %919 = vmatprep.subr.mxu0 0.0
          %920 = vmatpush1.msra.mxu0 0.0
          %921 = vmatprep.subr.mxu0 0.0
          %922 = vmatpush1.msra.mxu0 0.0
          %923 = vmatprep.subr.mxu0 0.0
          %924 = vmatpush1.msra.mxu0 0.0
          %925 = vmatprep.subr.mxu0 0.0
          %926 = vmatpush1.msra.mxu0 0.0
          %927 = vmatprep.subr.mxu0 0.0
          %928 = vmatpush1.msra.mxu0 0.0
          %929 = vmatprep.subr.mxu0 0.0
          %930 = vmatpush1.msra.mxu0 0.0
          %931 = vmatprep.subr.mxu0 0.0
          %932 = vmatpush1.msra.mxu0 0.0
          %933 = vmatprep.subr.mxu0 0.0
          %934 = vmatpush1.msra.mxu0 0.0
          %935 = vmatprep.subr.mxu0 0.0
          %936 = vmatpush1.msra.mxu0 0.0
          %937 = vmatprep.subr.mxu0 0.0
          %938 = vmatpush1.msra.mxu0 0.0
          %939 = vmatprep.subr.mxu0 0.0
          %940 = vmatpush1.msra.mxu0 0.0
          %941 = vmatprep.subr.mxu0 0.0
          %942 = vmatpush1.msra.mxu0 0.0
          %943 = vmatprep.subr.mxu0 0.0
          %944 = vmatpush1.msra.mxu0 0.0
          %945 = vmatprep.subr.mxu0 0.0
          %946 = vmatpush1.msra.mxu0 0.0
          %947 = vmatprep.subr.mxu0 0.0
          %948 = vmatpush1.msra.mxu0 0.0
          %949 = vmatprep.mubr.f32.mxu0 0.0
          %950 = vmatmul.mubr.f32.gmra.mrb[0].mxu0 %v883
          %v951 = vpop.f32.mrb[0].mxu0
          %v952 = vadd.f32 0.0, %v951
          %v953 = vpop.f32.mrb[0].mxu0
          %954 = vdwg.mxu0
          %v956 = vsel %vm687, %v745, 0
          %958 = vmatprep.subr.mxu0 0.0
          %959 = vmatpush1.msra.mxu0 %v807
          %960 = vmatprep.subr.mxu0 0.0
          %961 = vmatpush1.msra.mxu0 0.0
          %962 = vmatprep.subr.mxu0 0.0
          %963 = vmatpush1.msra.mxu0 0.0
          %964 = vmatprep.subr.mxu0 0.0
          %965 = vmatpush1.msra.mxu0 0.0
          %966 = vmatprep.subr.mxu0 0.0
          %967 = vmatpush1.msra.mxu0 0.0
          %968 = vmatprep.subr.mxu0 0.0
          %969 = vmatpush1.msra.mxu0 0.0
          %970 = vmatprep.subr.mxu0 0.0
          %971 = vmatpush1.msra.mxu0 0.0
          %972 = vmatprep.subr.mxu0 0.0
          %973 = vmatpush1.msra.mxu0 0.0
          %974 = vmatprep.subr.mxu0 0.0
          %975 = vmatpush1.msra.mxu0 0.0
          %976 = vmatprep.subr.mxu0 0.0
          %977 = vmatpush1.msra.mxu0 0.0
          %978 = vmatprep.subr.mxu0 0.0
          %979 = vmatpush1.msra.mxu0 0.0
          %980 = vmatprep.subr.mxu0 0.0
          %981 = vmatpush1.msra.mxu0 0.0
          %982 = vmatprep.subr.mxu0 0.0
          %983 = vmatpush1.msra.mxu0 0.0
          %984 = vmatprep.subr.mxu0 0.0
          %985 = vmatpush1.msra.mxu0 0.0
          %986 = vmatprep.subr.mxu0 0.0
          %987 = vmatpush1.msra.mxu0 0.0
          %988 = vmatprep.subr.mxu0 0.0
          %989 = vmatpush1.msra.mxu0 0.0
          %990 = vmatprep.subr.mxu0 0.0
          %991 = vmatpush1.msra.mxu0 0.0
          %992 = vmatprep.subr.mxu0 0.0
          %993 = vmatpush1.msra.mxu0 0.0
          %994 = vmatprep.subr.mxu0 0.0
          %995 = vmatpush1.msra.mxu0 0.0
          %996 = vmatprep.subr.mxu0 0.0
          %997 = vmatpush1.msra.mxu0 0.0
          %998 = vmatprep.subr.mxu0 0.0
          %999 = vmatpush1.msra.mxu0 0.0
          %1000 = vmatprep.subr.mxu0 0.0
          %1001 = vmatpush1.msra.mxu0 0.0
          %1002 = vmatprep.subr.mxu0 0.0
          %1003 = vmatpush1.msra.mxu0 0.0
          %1004 = vmatprep.subr.mxu0 0.0
          %1005 = vmatpush1.msra.mxu0 0.0
          %1006 = vmatprep.subr.mxu0 0.0
          %1007 = vmatpush1.msra.mxu0 0.0
          %1008 = vmatprep.subr.mxu0 0.0
          %1009 = vmatpush1.msra.mxu0 0.0
          %1010 = vmatprep.subr.mxu0 0.0
          %1011 = vmatpush1.msra.mxu0 0.0
          %1012 = vmatprep.subr.mxu0 0.0
          %1013 = vmatpush1.msra.mxu0 0.0
          %1014 = vmatprep.subr.mxu0 0.0
          %1015 = vmatpush1.msra.mxu0 0.0
          %1016 = vmatprep.subr.mxu0 0.0
          %1017 = vmatpush1.msra.mxu0 0.0
          %1018 = vmatprep.subr.mxu0 0.0
          %1019 = vmatpush1.msra.mxu0 0.0
          %1020 = vmatprep.subr.mxu0 0.0
          %1021 = vmatpush1.msra.mxu0 0.0
          %1022 = vmatprep.mubr.f32.mxu0 0.0
          %1023 = vmatmul.mubr.f32.gmra.mrb[0].mxu0 %v956
          %v1024 = vpop.f32.mrb[0].mxu0
          %v1025 = vadd.f32 0.0, %v1024
          %v1026 = vpop.f32.mrb[0].mxu0
          %1027 = vdwg.mxu0
          %v1029 = vsel %vm687, %v747, 0
          %1031 = vmatprep.subr.mxu0 0.0
          %1032 = vmatpush1.msra.mxu0 %v808
          %1033 = vmatprep.subr.mxu0 0.0
          %1034 = vmatpush1.msra.mxu0 0.0
          %1035 = vmatprep.subr.mxu0 0.0
          %1036 = vmatpush1.msra.mxu0 0.0
          %1037 = vmatprep.subr.mxu0 0.0
          %1038 = vmatpush1.msra.mxu0 0.0
          %1039 = vmatprep.subr.mxu0 0.0
          %1040 = vmatpush1.msra.mxu0 0.0
          %1041 = vmatprep.subr.mxu0 0.0
          %1042 = vmatpush1.msra.mxu0 0.0
          %1043 = vmatprep.subr.mxu0 0.0
          %1044 = vmatpush1.msra.mxu0 0.0
          %1045 = vmatprep.subr.mxu0 0.0
          %1046 = vmatpush1.msra.mxu0 0.0
          %1047 = vmatprep.subr.mxu0 0.0
          %1048 = vmatpush1.msra.mxu0 0.0
          %1049 = vmatprep.subr.mxu0 0.0
          %1050 = vmatpush1.msra.mxu0 0.0
          %1051 = vmatprep.subr.mxu0 0.0
          %1052 = vmatpush1.msra.mxu0 0.0
          %1053 = vmatprep.subr.mxu0 0.0
          %1054 = vmatpush1.msra.mxu0 0.0
          %1055 = vmatprep.subr.mxu0 0.0
          %1056 = vmatpush1.msra.mxu0 0.0
          %1057 = vmatprep.subr.mxu0 0.0
          %1058 = vmatpush1.msra.mxu0 0.0
          %1059 = vmatprep.subr.mxu0 0.0
          %1060 = vmatpush1.msra.mxu0 0.0
          %1061 = vmatprep.subr.mxu0 0.0
          %1062 = vmatpush1.msra.mxu0 0.0
          %1063 = vmatprep.subr.mxu0 0.0
          %1064 = vmatpush1.msra.mxu0 0.0
          %1065 = vmatprep.subr.mxu0 0.0
          %1066 = vmatpush1.msra.mxu0 0.0
          %1067 = vmatprep.subr.mxu0 0.0
          %1068 = vmatpush1.msra.mxu0 0.0
          %1069 = vmatprep.subr.mxu0 0.0
          %1070 = vmatpush1.msra.mxu0 0.0
          %1071 = vmatprep.subr.mxu0 0.0
          %1072 = vmatpush1.msra.mxu0 0.0
          %1073 = vmatprep.subr.mxu0 0.0
          %1074 = vmatpush1.msra.mxu0 0.0
          %1075 = vmatprep.subr.mxu0 0.0
          %1076 = vmatpush1.msra.mxu0 0.0
          %1077 = vmatprep.subr.mxu0 0.0
          %1078 = vmatpush1.msra.mxu0 0.0
          %1079 = vmatprep.subr.mxu0 0.0
          %1080 = vmatpush1.msra.mxu0 0.0
          %1081 = vmatprep.subr.mxu0 0.0
          %1082 = vmatpush1.msra.mxu0 0.0
          %1083 = vmatprep.subr.mxu0 0.0
          %1084 = vmatpush1.msra.mxu0 0.0
          %1085 = vmatprep.subr.mxu0 0.0
          %1086 = vmatpush1.msra.mxu0 0.0
          %1087 = vmatprep.subr.mxu0 0.0
          %1088 = vmatpush1.msra.mxu0 0.0
          %1089 = vmatprep.subr.mxu0 0.0
          %1090 = vmatpush1.msra.mxu0 0.0
          %1091 = vmatprep.subr.mxu0 0.0
          %1092 = vmatpush1.msra.mxu0 0.0
          %1093 = vmatprep.subr.mxu0 0.0
          %1094 = vmatpush1.msra.mxu0 0.0
          %1095 = vmatprep.mubr.f32.mxu0 0.0
          %1096 = vmatmul.mubr.f32.gmra.mrb[0].mxu0 %v1029
          %v1097 = vpop.f32.mrb[0].mxu0
          %v1098 = vadd.f32 0.0, %v1097
          %v1099 = vpop.f32.mrb[0].mxu0
          %1100 = vdwg.mxu0
          %v1101 = vadd.f32 %v801, %v879
          %v1102 = vadd.f32 %v802, %v952
          %v1103 = vadd.f32 %v803, %v1025
          %v1104 = vadd.f32 %v804, %v1098
          %1105 = vst.msk [vmem:[#allocation5] sm:$0xff] %vm356, %v1101
          %1106 = vst.msk [vmem:[#allocation5 + $0x8] sm:$0xff] %vm356, %v1102
          %1107 = vst.msk [vmem:[#allocation5 + $0x10] sm:$0xff] %vm356, %v1103
          %1108 = vst.msk [vmem:[#allocation5 + $0x18] sm:$0xff] %vm356, %v1104
          %1109 = vst.msk [vmem:[#allocation3] sm:$0xff] %vm772, %v700
          %1110 = vst.msk [vmem:[#allocation3 + $0x8] sm:$0xff] %vm772, %v701
          %1111 = vst.msk [vmem:[#allocation3 + $0x10] sm:$0xff] %vm772, %v702
          %1112 = vst.msk [vmem:[#allocation3 + $0x18] sm:$0xff] %vm772, %v703
        $region52: #{tpu_custom_call.1} parent=31 // pred_fallthru
          _
        %p1113 = scmp.le.s32.totalorder %s662, %s663
        // Predicated region
        $region53: #{tpu_custom_call.1} parent=31 // pred_check
          %p1114 = pneg %p1113
        $region54: #{tpu_custom_call.1} parent=31 // pred_check_branch
          %1116 = sbr.rel (%p1114) target = $region56
        $region55: #{tpu_custom_call.1} parent=31 // pred_region
          %v1117 = vld [vmem:[#allocation3] sm:$0xff]
          %v1118 = vld [vmem:[#allocation3 + $0x8] sm:$0xff]
          %v1119 = vld [vmem:[#allocation3 + $0x10] sm:$0xff]
          %v1120 = vld [vmem:[#allocation3 + $0x18] sm:$0xff]
          %vm1121 = vcmask 64512
          %v1122 = vsel %vm1121, %v430, -inf
          %1123 = vmax.xlane.f32.xlu0 %v1122
          %v1124 = vpop.xlane.xlu0 %1123
          %v1125 = vsel %vm1121, %v506, -inf
          %1126 = vmax.xlane.f32.xlu0 %v1125
          %v1127 = vpop.xlane.xlu0 %1126
          %v1128 = vsel %vm1121, %v582, -inf
          %1129 = vmax.xlane.f32.xlu0 %v1128
          %v1130 = vpop.xlane.xlu0 %1129
          %v1131 = vsel %vm1121, %v658, -inf
          %1132 = vmax.xlane.f32.xlu0 %v1131
          %v1133 = vpop.xlane.xlu0 %1132
          %v1134 = vmax.f32 %v1117, %v1124
          %v1135 = vmax.f32 %v1118, %v1127
          %v1136 = vmax.f32 %v1119, %v1130
          %v1137 = vmax.f32 %v1120, %v1133
          %v1138 = vsub.f32 %v1117, %v1134
          %v1139 = vsub.f32 %v1118, %v1135
          %v1140 = vsub.f32 %v1119, %v1136
          %v1141 = vsub.f32 %v1120, %v1137
          %v1142 = vmul.f32 %v1138, 1.442695
          %v1143 = vpow.pop %v1142
          %v1144 = vmul.f32 %v1139, 1.442695
          %v1145 = vpow.pop %v1144
          %v1146 = vmul.f32 %v1140, 1.442695
          %v1147 = vpow.pop %v1146
          %v1148 = vmul.f32 %v1141, 1.442695
          %v1149 = vpow.pop %v1148
          %1151 = vset.pattern.permute.xlu0 0
          %1152 = vperm.xlu0 %1151, %v1134
          %v1153 = vpop.permute.xlu0 %1152
          %1156 = vset.pattern.permute.xlu0 0
          %1157 = vperm.xlu0 %1156, %v1135
          %v1158 = vpop.permute.xlu0 %1157
          %1161 = vset.pattern.permute.xlu0 0
          %1162 = vperm.xlu0 %1161, %v1136
          %v1163 = vpop.permute.xlu0 %1162
          %1166 = vset.pattern.permute.xlu0 0
          %1167 = vperm.xlu0 %1166, %v1137
          %v1168 = vpop.permute.xlu0 %1167
          %v1170 = vsub.f32 %v430, %v1153
          %v1171 = vsub.f32 %v506, %v1158
          %v1172 = vsub.f32 %v582, %v1163
          %v1173 = vsub.f32 %v658, %v1168
          %v1174 = vmul.f32 %v1170, 1.442695
          %v1175 = vpow.pop %v1174
          %v1176 = vmul.f32 %v1171, 1.442695
          %v1177 = vpow.pop %v1176
          %v1178 = vmul.f32 %v1172, 1.442695
          %v1179 = vpow.pop %v1178
          %v1180 = vmul.f32 %v1173, 1.442695
          %v1181 = vpow.pop %v1180
          %v1182 = vld [vmem:[#allocation4] sm:$0xff]
          %v1183 = vld [vmem:[#allocation4 + $0x8] sm:$0xff]
          %v1184 = vld [vmem:[#allocation4 + $0x10] sm:$0xff]
          %v1185 = vld [vmem:[#allocation4 + $0x18] sm:$0xff]
          %v1186 = vmul.f32 %v1143, %v1182
          %v1187 = vmul.f32 %v1145, %v1183
          %v1188 = vmul.f32 %v1147, %v1184
          %v1189 = vmul.f32 %v1149, %v1185
          %v1190 = vsel %vm1121, %v1175, 0.0
          %1191 = vadd.xlane.f32.xlu0 %v1190
          %v1192 = vpop.xlane.xlu0 %1191
          %v1193 = vsel %vm1121, %v1177, 0.0
          %1194 = vadd.xlane.f32.xlu0 %v1193
          %v1195 = vpop.xlane.xlu0 %1194
          %v1196 = vsel %vm1121, %v1179, 0.0
          %1197 = vadd.xlane.f32.xlu0 %v1196
          %v1198 = vpop.xlane.xlu0 %1197
          %v1199 = vsel %vm1121, %v1181, 0.0
          %1200 = vadd.xlane.f32.xlu0 %v1199
          %v1201 = vpop.xlane.xlu0 %1200
          %v1202 = vadd.f32 %v1186, %v1192
          %v1203 = vadd.f32 %v1187, %v1195
          %v1204 = vadd.f32 %v1188, %v1198
          %v1205 = vadd.f32 %v1189, %v1201
          %vm1206 = vcmask 7168
          %1207 = vst.msk [vmem:[#allocation4] sm:$0xff] %vm1206, %v1202
          %1208 = vst.msk [vmem:[#allocation4 + $0x8] sm:$0xff] %vm1206, %v1203
          %1209 = vst.msk [vmem:[#allocation4 + $0x10] sm:$0xff] %vm1206, %v1204
          %1210 = vst.msk [vmem:[#allocation4 + $0x18] sm:$0xff] %vm1206, %v1205
          %v1211 = vld [vmem:[#allocation5] sm:$0xff]
          %v1212 = vld [vmem:[#allocation5 + $0x8] sm:$0xff]
          %v1213 = vld [vmem:[#allocation5 + $0x10] sm:$0xff]
          %v1214 = vld [vmem:[#allocation5 + $0x18] sm:$0xff]
          %1216 = vset.pattern.permute.xlu0 0
          %1217 = vperm.xlu0 %1216, %v1143
          %v1218 = vpop.permute.xlu0 %1217
          %1221 = vset.pattern.permute.xlu0 0
          %1222 = vperm.xlu0 %1221, %v1145
          %v1223 = vpop.permute.xlu0 %1222
          %1226 = vset.pattern.permute.xlu0 0
          %1227 = vperm.xlu0 %1226, %v1147
          %v1228 = vpop.permute.xlu0 %1227
          %1231 = vset.pattern.permute.xlu0 0
          %1232 = vperm.xlu0 %1231, %v1149
          %v1233 = vpop.permute.xlu0 %1232
          %v1235 = vmul.f32 %v1218, %v1211
          %v1236 = vmul.f32 %v1223, %v1212
          %v1237 = vmul.f32 %v1228, %v1213
          %v1238 = vmul.f32 %v1233, %v1214
          %v1239 = vld [vmem:[%s273] sm:$0xff]
          %v1240 = vld [vmem:[%s273 + $0x8] sm:$0xff]
          %v1241 = vld [vmem:[%s273 + $0x10] sm:$0xff]
          %v1242 = vld [vmem:[%s273 + $0x18] sm:$0xff]
          %v1244 = vsel %vm1121, %v1175, 0
          %1246 = vmatprep.subr.mxu0 0.0
          %1247 = vmatpush1.msra.mxu0 %v1239
          %1248 = vmatprep.subr.mxu0 0.0
          %1249 = vmatpush1.msra.mxu0 0.0
          %1250 = vmatprep.subr.mxu0 0.0
          %1251 = vmatpush1.msra.mxu0 0.0
          %1252 = vmatprep.subr.mxu0 0.0
          %1253 = vmatpush1.msra.mxu0 0.0
          %1254 = vmatprep.subr.mxu0 0.0
          %1255 = vmatpush1.msra.mxu0 0.0
          %1256 = vmatprep.subr.mxu0 0.0
          %1257 = vmatpush1.msra.mxu0 0.0
          %1258 = vmatprep.subr.mxu0 0.0
          %1259 = vmatpush1.msra.mxu0 0.0
          %1260 = vmatprep.subr.mxu0 0.0
          %1261 = vmatpush1.msra.mxu0 0.0
          %1262 = vmatprep.subr.mxu0 0.0
          %1263 = vmatpush1.msra.mxu0 0.0
          %1264 = vmatprep.subr.mxu0 0.0
          %1265 = vmatpush1.msra.mxu0 0.0
          %1266 = vmatprep.subr.mxu0 0.0
          %1267 = vmatpush1.msra.mxu0 0.0
          %1268 = vmatprep.subr.mxu0 0.0
          %1269 = vmatpush1.msra.mxu0 0.0
          %1270 = vmatprep.subr.mxu0 0.0
          %1271 = vmatpush1.msra.mxu0 0.0
          %1272 = vmatprep.subr.mxu0 0.0
          %1273 = vmatpush1.msra.mxu0 0.0
          %1274 = vmatprep.subr.mxu0 0.0
          %1275 = vmatpush1.msra.mxu0 0.0
          %1276 = vmatprep.subr.mxu0 0.0
          %1277 = vmatpush1.msra.mxu0 0.0
          %1278 = vmatprep.subr.mxu0 0.0
          %1279 = vmatpush1.msra.mxu0 0.0
          %1280 = vmatprep.subr.mxu0 0.0
          %1281 = vmatpush1.msra.mxu0 0.0
          %1282 = vmatprep.subr.mxu0 0.0
          %1283 = vmatpush1.msra.mxu0 0.0
          %1284 = vmatprep.subr.mxu0 0.0
          %1285 = vmatpush1.msra.mxu0 0.0
          %1286 = vmatprep.subr.mxu0 0.0
          %1287 = vmatpush1.msra.mxu0 0.0
          %1288 = vmatprep.subr.mxu0 0.0
          %1289 = vmatpush1.msra.mxu0 0.0
          %1290 = vmatprep.subr.mxu0 0.0
          %1291 = vmatpush1.msra.mxu0 0.0
          %1292 = vmatprep.subr.mxu0 0.0
          %1293 = vmatpush1.msra.mxu0 0.0
          %1294 = vmatprep.subr.mxu0 0.0
          %1295 = vmatpush1.msra.mxu0 0.0
          %1296 = vmatprep.subr.mxu0 0.0
          %1297 = vmatpush1.msra.mxu0 0.0
          %1298 = vmatprep.subr.mxu0 0.0
          %1299 = vmatpush1.msra.mxu0 0.0
          %1300 = vmatprep.subr.mxu0 0.0
          %1301 = vmatpush1.msra.mxu0 0.0
          %1302 = vmatprep.subr.mxu0 0.0
          %1303 = vmatpush1.msra.mxu0 0.0
          %1304 = vmatprep.subr.mxu0 0.0
          %1305 = vmatpush1.msra.mxu0 0.0
          %1306 = vmatprep.subr.mxu0 0.0
          %1307 = vmatpush1.msra.mxu0 0.0
          %1308 = vmatprep.subr.mxu0 0.0
          %1309 = vmatpush1.msra.mxu0 0.0
          %1310 = vmatprep.mubr.f32.mxu0 0.0
          %1311 = vmatmul.mubr.f32.gmra.mrb[0].mxu0 %v1244
          %v1312 = vpop.f32.mrb[0].mxu0
          %v1313 = vadd.f32 0.0, %v1312
          %v1314 = vpop.f32.mrb[0].mxu0
          %1315 = vdwg.mxu0
          %v1317 = vsel %vm1121, %v1177, 0
          %1319 = vmatprep.subr.mxu0 0.0
          %1320 = vmatpush1.msra.mxu0 %v1240
          %1321 = vmatprep.subr.mxu0 0.0
          %1322 = vmatpush1.msra.mxu0 0.0
          %1323 = vmatprep.subr.mxu0 0.0
          %1324 = vmatpush1.msra.mxu0 0.0
          %1325 = vmatprep.subr.mxu0 0.0
          %1326 = vmatpush1.msra.mxu0 0.0
          %1327 = vmatprep.subr.mxu0 0.0
          %1328 = vmatpush1.msra.mxu0 0.0
          %1329 = vmatprep.subr.mxu0 0.0
          %1330 = vmatpush1.msra.mxu0 0.0
          %1331 = vmatprep.subr.mxu0 0.0
          %1332 = vmatpush1.msra.mxu0 0.0
          %1333 = vmatprep.subr.mxu0 0.0
          %1334 = vmatpush1.msra.mxu0 0.0
          %1335 = vmatprep.subr.mxu0 0.0
          %1336 = vmatpush1.msra.mxu0 0.0
          %1337 = vmatprep.subr.mxu0 0.0
          %1338 = vmatpush1.msra.mxu0 0.0
          %1339 = vmatprep.subr.mxu0 0.0
          %1340 = vmatpush1.msra.mxu0 0.0
          %1341 = vmatprep.subr.mxu0 0.0
          %1342 = vmatpush1.msra.mxu0 0.0
          %1343 = vmatprep.subr.mxu0 0.0
          %1344 = vmatpush1.msra.mxu0 0.0
          %1345 = vmatprep.subr.mxu0 0.0
          %1346 = vmatpush1.msra.mxu0 0.0
          %1347 = vmatprep.subr.mxu0 0.0
          %1348 = vmatpush1.msra.mxu0 0.0
          %1349 = vmatprep.subr.mxu0 0.0
          %1350 = vmatpush1.msra.mxu0 0.0
          %1351 = vmatprep.subr.mxu0 0.0
          %1352 = vmatpush1.msra.mxu0 0.0
          %1353 = vmatprep.subr.mxu0 0.0
          %1354 = vmatpush1.msra.mxu0 0.0
          %1355 = vmatprep.subr.mxu0 0.0
          %1356 = vmatpush1.msra.mxu0 0.0
          %1357 = vmatprep.subr.mxu0 0.0
          %1358 = vmatpush1.msra.mxu0 0.0
          %1359 = vmatprep.subr.mxu0 0.0
          %1360 = vmatpush1.msra.mxu0 0.0
          %1361 = vmatprep.subr.mxu0 0.0
          %1362 = vmatpush1.msra.mxu0 0.0
          %1363 = vmatprep.subr.mxu0 0.0
          %1364 = vmatpush1.msra.mxu0 0.0
          %1365 = vmatprep.subr.mxu0 0.0
          %1366 = vmatpush1.msra.mxu0 0.0
          %1367 = vmatprep.subr.mxu0 0.0
          %1368 = vmatpush1.msra.mxu0 0.0
          %1369 = vmatprep.subr.mxu0 0.0
          %1370 = vmatpush1.msra.mxu0 0.0
          %1371 = vmatprep.subr.mxu0 0.0
          %1372 = vmatpush1.msra.mxu0 0.0
          %1373 = vmatprep.subr.mxu0 0.0
          %1374 = vmatpush1.msra.mxu0 0.0
          %1375 = vmatprep.subr.mxu0 0.0
          %1376 = vmatpush1.msra.mxu0 0.0
          %1377 = vmatprep.subr.mxu0 0.0
          %1378 = vmatpush1.msra.mxu0 0.0
          %1379 = vmatprep.subr.mxu0 0.0
          %1380 = vmatpush1.msra.mxu0 0.0
          %1381 = vmatprep.subr.mxu0 0.0
          %1382 = vmatpush1.msra.mxu0 0.0
          %1383 = vmatprep.mubr.f32.mxu0 0.0
          %1384 = vmatmul.mubr.f32.gmra.mrb[0].mxu0 %v1317
          %v1385 = vpop.f32.mrb[0].mxu0
          %v1386 = vadd.f32 0.0, %v1385
          %v1387 = vpop.f32.mrb[0].mxu0
          %1388 = vdwg.mxu0
          %v1390 = vsel %vm1121, %v1179, 0
          %1392 = vmatprep.subr.mxu0 0.0
          %1393 = vmatpush1.msra.mxu0 %v1241
          %1394 = vmatprep.subr.mxu0 0.0
          %1395 = vmatpush1.msra.mxu0 0.0
          %1396 = vmatprep.subr.mxu0 0.0
          %1397 = vmatpush1.msra.mxu0 0.0
          %1398 = vmatprep.subr.mxu0 0.0
          %1399 = vmatpush1.msra.mxu0 0.0
          %1400 = vmatprep.subr.mxu0 0.0
          %1401 = vmatpush1.msra.mxu0 0.0
          %1402 = vmatprep.subr.mxu0 0.0
          %1403 = vmatpush1.msra.mxu0 0.0
          %1404 = vmatprep.subr.mxu0 0.0
          %1405 = vmatpush1.msra.mxu0 0.0
          %1406 = vmatprep.subr.mxu0 0.0
          %1407 = vmatpush1.msra.mxu0 0.0
          %1408 = vmatprep.subr.mxu0 0.0
          %1409 = vmatpush1.msra.mxu0 0.0
          %1410 = vmatprep.subr.mxu0 0.0
          %1411 = vmatpush1.msra.mxu0 0.0
          %1412 = vmatprep.subr.mxu0 0.0
          %1413 = vmatpush1.msra.mxu0 0.0
          %1414 = vmatprep.subr.mxu0 0.0
          %1415 = vmatpush1.msra.mxu0 0.0
          %1416 = vmatprep.subr.mxu0 0.0
          %1417 = vmatpush1.msra.mxu0 0.0
          %1418 = vmatprep.subr.mxu0 0.0
          %1419 = vmatpush1.msra.mxu0 0.0
          %1420 = vmatprep.subr.mxu0 0.0
          %1421 = vmatpush1.msra.mxu0 0.0
          %1422 = vmatprep.subr.mxu0 0.0
          %1423 = vmatpush1.msra.mxu0 0.0
          %1424 = vmatprep.subr.mxu0 0.0
          %1425 = vmatpush1.msra.mxu0 0.0
          %1426 = vmatprep.subr.mxu0 0.0
          %1427 = vmatpush1.msra.mxu0 0.0
          %1428 = vmatprep.subr.mxu0 0.0
          %1429 = vmatpush1.msra.mxu0 0.0
          %1430 = vmatprep.subr.mxu0 0.0
          %1431 = vmatpush1.msra.mxu0 0.0
          %1432 = vmatprep.subr.mxu0 0.0
          %1433 = vmatpush1.msra.mxu0 0.0
          %1434 = vmatprep.subr.mxu0 0.0
          %1435 = vmatpush1.msra.mxu0 0.0
          %1436 = vmatprep.subr.mxu0 0.0
          %1437 = vmatpush1.msra.mxu0 0.0
          %1438 = vmatprep.subr.mxu0 0.0
          %1439 = vmatpush1.msra.mxu0 0.0
          %1440 = vmatprep.subr.mxu0 0.0
          %1441 = vmatpush1.msra.mxu0 0.0
          %1442 = vmatprep.subr.mxu0 0.0
          %1443 = vmatpush1.msra.mxu0 0.0
          %1444 = vmatprep.subr.mxu0 0.0
          %1445 = vmatpush1.msra.mxu0 0.0
          %1446 = vmatprep.subr.mxu0 0.0
          %1447 = vmatpush1.msra.mxu0 0.0
          %1448 = vmatprep.subr.mxu0 0.0
          %1449 = vmatpush1.msra.mxu0 0.0
          %1450 = vmatprep.subr.mxu0 0.0
          %1451 = vmatpush1.msra.mxu0 0.0
          %1452 = vmatprep.subr.mxu0 0.0
          %1453 = vmatpush1.msra.mxu0 0.0
          %1454 = vmatprep.subr.mxu0 0.0
          %1455 = vmatpush1.msra.mxu0 0.0
          %1456 = vmatprep.mubr.f32.mxu0 0.0
          %1457 = vmatmul.mubr.f32.gmra.mrb[0].mxu0 %v1390
          %v1458 = vpop.f32.mrb[0].mxu0
          %v1459 = vadd.f32 0.0, %v1458
          %v1460 = vpop.f32.mrb[0].mxu0
          %1461 = vdwg.mxu0
          %v1463 = vsel %vm1121, %v1181, 0
          %1465 = vmatprep.subr.mxu0 0.0
          %1466 = vmatpush1.msra.mxu0 %v1242
          %1467 = vmatprep.subr.mxu0 0.0
          %1468 = vmatpush1.msra.mxu0 0.0
          %1469 = vmatprep.subr.mxu0 0.0
          %1470 = vmatpush1.msra.mxu0 0.0
          %1471 = vmatprep.subr.mxu0 0.0
          %1472 = vmatpush1.msra.mxu0 0.0
          %1473 = vmatprep.subr.mxu0 0.0
          %1474 = vmatpush1.msra.mxu0 0.0
          %1475 = vmatprep.subr.mxu0 0.0
          %1476 = vmatpush1.msra.mxu0 0.0
          %1477 = vmatprep.subr.mxu0 0.0
          %1478 = vmatpush1.msra.mxu0 0.0
          %1479 = vmatprep.subr.mxu0 0.0
          %1480 = vmatpush1.msra.mxu0 0.0
          %1481 = vmatprep.subr.mxu0 0.0
          %1482 = vmatpush1.msra.mxu0 0.0
          %1483 = vmatprep.subr.mxu0 0.0
          %1484 = vmatpush1.msra.mxu0 0.0
          %1485 = vmatprep.subr.mxu0 0.0
          %1486 = vmatpush1.msra.mxu0 0.0
          %1487 = vmatprep.subr.mxu0 0.0
          %1488 = vmatpush1.msra.mxu0 0.0
          %1489 = vmatprep.subr.mxu0 0.0
          %1490 = vmatpush1.msra.mxu0 0.0
          %1491 = vmatprep.subr.mxu0 0.0
          %1492 = vmatpush1.msra.mxu0 0.0
          %1493 = vmatprep.subr.mxu0 0.0
          %1494 = vmatpush1.msra.mxu0 0.0
          %1495 = vmatprep.subr.mxu0 0.0
          %1496 = vmatpush1.msra.mxu0 0.0
          %1497 = vmatprep.subr.mxu0 0.0
          %1498 = vmatpush1.msra.mxu0 0.0
          %1499 = vmatprep.subr.mxu0 0.0
          %1500 = vmatpush1.msra.mxu0 0.0
          %1501 = vmatprep.subr.mxu0 0.0
          %1502 = vmatpush1.msra.mxu0 0.0
          %1503 = vmatprep.subr.mxu0 0.0
          %1504 = vmatpush1.msra.mxu0 0.0
          %1505 = vmatprep.subr.mxu0 0.0
          %1506 = vmatpush1.msra.mxu0 0.0
          %1507 = vmatprep.subr.mxu0 0.0
          %1508 = vmatpush1.msra.mxu0 0.0
          %1509 = vmatprep.subr.mxu0 0.0
          %1510 = vmatpush1.msra.mxu0 0.0
          %1511 = vmatprep.subr.mxu0 0.0
          %1512 = vmatpush1.msra.mxu0 0.0
          %1513 = vmatprep.subr.mxu0 0.0
          %1514 = vmatpush1.msra.mxu0 0.0
          %1515 = vmatprep.subr.mxu0 0.0
          %1516 = vmatpush1.msra.mxu0 0.0
          %1517 = vmatprep.subr.mxu0 0.0
          %1518 = vmatpush1.msra.mxu0 0.0
          %1519 = vmatprep.subr.mxu0 0.0
          %1520 = vmatpush1.msra.mxu0 0.0
          %1521 = vmatprep.subr.mxu0 0.0
          %1522 = vmatpush1.msra.mxu0 0.0
          %1523 = vmatprep.subr.mxu0 0.0
          %1524 = vmatpush1.msra.mxu0 0.0
          %1525 = vmatprep.subr.mxu0 0.0
          %1526 = vmatpush1.msra.mxu0 0.0
          %1527 = vmatprep.subr.mxu0 0.0
          %1528 = vmatpush1.msra.mxu0 0.0
          %1529 = vmatprep.mubr.f32.mxu0 0.0
          %1530 = vmatmul.mubr.f32.gmra.mrb[0].mxu0 %v1463
          %v1531 = vpop.f32.mrb[0].mxu0
          %v1532 = vadd.f32 0.0, %v1531
          %v1533 = vpop.f32.mrb[0].mxu0
          %1534 = vdwg.mxu0
          %v1535 = vadd.f32 %v1235, %v1313
          %v1536 = vadd.f32 %v1236, %v1386
          %v1537 = vadd.f32 %v1237, %v1459
          %v1538 = vadd.f32 %v1238, %v1532
          %1539 = vst.msk [vmem:[#allocation5] sm:$0xff] %vm356, %v1535
          %1540 = vst.msk [vmem:[#allocation5 + $0x8] sm:$0xff] %vm356, %v1536
          %1541 = vst.msk [vmem:[#allocation5 + $0x10] sm:$0xff] %vm356, %v1537
          %1542 = vst.msk [vmem:[#allocation5 + $0x18] sm:$0xff] %vm356, %v1538
          %1543 = vst.msk [vmem:[#allocation3] sm:$0xff] %vm1206, %v1134
          %1544 = vst.msk [vmem:[#allocation3 + $0x8] sm:$0xff] %vm1206, %v1135
          %1545 = vst.msk [vmem:[#allocation3 + $0x10] sm:$0xff] %vm1206, %v1136
          %1546 = vst.msk [vmem:[#allocation3 + $0x18] sm:$0xff] %vm1206, %v1137
        $region56: #{tpu_custom_call.1} parent=31 // pred_fallthru
          _
        // Predicated region
        $region57: #{tpu_custom_call.1} parent=31 // pred_check
          %p1547 = pneg %p317
        $region58: #{tpu_custom_call.1} parent=31 // pred_check_branch
          %1549 = sbr.rel (%p1547) target = $region60
        $region59: #{tpu_custom_call.1} parent=31 // pred_region
          %v1550 = vld [vmem:[#allocation5] sm:$0xff]
          %v1551 = vld [vmem:[#allocation5 + $0x8] sm:$0xff]
          %v1552 = vld [vmem:[#allocation5 + $0x10] sm:$0xff]
          %v1553 = vld [vmem:[#allocation5 + $0x18] sm:$0xff]
          %v1554 = vld [vmem:[#allocation4] sm:$0xff]
          %v1555 = vld [vmem:[#allocation4 + $0x8] sm:$0xff]
          %v1556 = vld [vmem:[#allocation4 + $0x10] sm:$0xff]
          %v1557 = vld [vmem:[#allocation4 + $0x18] sm:$0xff]
          %v1558 = vrcp.pop %v1554
          %v1559 = vrcp.pop %v1555
          %v1560 = vrcp.pop %v1556
          %v1561 = vrcp.pop %v1557
          %1563 = vset.pattern.permute.xlu0 0
          %1564 = vperm.xlu0 %1563, %v1558
          %v1565 = vpop.permute.xlu0 %1564
          %1568 = vset.pattern.permute.xlu0 0
          %1569 = vperm.xlu0 %1568, %v1559
          %v1570 = vpop.permute.xlu0 %1569
          %1573 = vset.pattern.permute.xlu0 0
          %1574 = vperm.xlu0 %1573, %v1560
          %v1575 = vpop.permute.xlu0 %1574
          %1578 = vset.pattern.permute.xlu0 0
          %1579 = vperm.xlu0 %1578, %v1561
          %v1580 = vpop.permute.xlu0 %1579
          %v1582 = vmul.f32 %v1550, %v1565
          %v1583 = vmul.f32 %v1551, %v1570
          %v1584 = vmul.f32 %v1552, %v1575
          %v1585 = vmul.f32 %v1553, %v1580
          %1586 = vst.msk [vmem:[%s305] sm:$0xff] %vm356, %v1582
          %1587 = vst.msk [vmem:[%s305 + $0x8] sm:$0xff] %vm356, %v1583
          %1588 = vst.msk [vmem:[%s305 + $0x10] sm:$0xff] %vm356, %v1584
          %1589 = vst.msk [vmem:[%s305 + $0x18] sm:$0xff] %vm356, %v1585
        $region60: #{tpu_custom_call.1} parent=31 // pred_fallthru
          _
        %s1590 = sand.u32 %s143, 1
        %s1591 = scalar_lea.sflag [#allocation12], %s1590
        %s1592 = sand.u32 %s143, 1
        %s1593 = smul.addr %s1592, 32
        %s1594 = scalar_lea.vmem [#allocation16], %s1593
        // Predicated region
        $region61: #{tpu_custom_call.1} parent=31 // pred_check
          %p1595 = pneg %p153
        $region62: #{tpu_custom_call.1} parent=31 // pred_check_branch
          %1597 = sbr.rel (%p1595) target = $region64
        $region63: #{tpu_custom_call.1} parent=31 // pred_region
          %s1598 = sld [smem:[#allocation7 + %s34]]
          %s1599 = smul.u32 4, %s33
          %s1601 = ssub.s32 512, 512
          %1602 = vsyncadd %s1591, %s1601
          %s1603 = sadd.s32 %s1598, %s1599
          %s1604 = smul.addr %s1603, 128
          %s1605 = scalar_lea.hbm %s6, %s1604
          %s1606 = sshll.u32 %s1594, 4
          %s1607 = int_to_ptr.vmem [resolvable:$true] %s1606
          %1612 = dma.vmem_to_hbm [thread:$0]  %s1607, 512, %s1605, %s1591, 128, 128, 8
        $region64: #{tpu_custom_call.1} parent=31 // pred_fallthru
          _
      $region32: #{tpu_custom_call.1} parent=5 // pred_fallthru
        _
      %p1613 = scmp.le.s32.totalorder 2, %s24
      // Predicated region
      $region65: #{tpu_custom_call.1} parent=5 // pred_check
        %p1614 = pneg %p1613
      $region66: #{tpu_custom_call.1} parent=5 // pred_check_branch
        %1616 = sbr.rel (%p1614) target = $region68
      $region67: #{tpu_custom_call.1} parent=5 // pred_region
        %s1617 = ssub.s32 %s24, 2
        // Predicated region
        $region69: #{tpu_custom_call.1} parent=67 // pred_check
          %p1618 = pneg %p159
        $region70: #{tpu_custom_call.1} parent=67 // pred_check_branch
          %1620 = sbr.rel (%p1618) target = $region72
        $region71: #{tpu_custom_call.1} parent=67 // pred_region
          %s1621 = sand.u32 %s144, 1
          %s1622 = scalar_lea.sflag [#allocation12], %s1621
          %s1623 = sand.u32 %s144, 1
          %s1624 = smul.addr %s1623, 32
          %s1625 = scalar_lea.vmem [#allocation16], %s1624
          %1626 = dma.done %s1622, 512
        $region72: #{tpu_custom_call.1} parent=67 // pred_fallthru
          _
      $region68: #{tpu_custom_call.1} parent=5 // pred_fallthru
        _
    $region6: #{tpu_custom_call.1} parent=1 // loop_footer
      %s28 = sadd.s32 1, %s24
    $region7: #{tpu_custom_call.1} parent=1 // loop_footer_branch
      %23 = sbr.rel target = $region3
    $region8: #{tpu_custom_call.1} parent=1 // loop_exit
      _
    %1627 = vsyncpa [#allocation11], 1
    %s1628 = scalar_lea.sflag [#allocation11], 1
    %1629 = vsyncpa %s1628, 1
    %1630 = vsyncpa [#allocation14], 1
    %s1631 = scalar_lea.sflag [#allocation14], 1
    %1632 = vsyncpa %s1631, 1
    %1633 = vsyncpa [#allocation12], 1
    %s1634 = scalar_lea.sflag [#allocation12], 1
    %1635 = vsyncpa %s1634, 1

</llo_original>
